<compile_context>
chip_gen: v7x
topology: tpu7x:2x2x1
jax: 0.10.0
libtpu: 0.0.40
codegen_flags: <defaults>
</compile_context>

<pallas_src>
import functools

import jax
import jax.numpy as jnp
from jax import lax
from jax.experimental import pallas as pl
from jax.experimental.pallas import tpu as pltpu


# ----------------------------------------------------------------------------
# Kernel
# ----------------------------------------------------------------------------
def _bilstm_kernel(emb_ref,               # (t_chunk*TB, E)  bf16 chunk of the sequence
                   wih_f_ref, whh_f_ref, b_f_ref,   # fwd dir: (E,4Hp) bf16, (Hp,4Hp) bf16, (1,4Hp) f32
                   wih_b_ref, b_b_ref,              # bwd dir: (E,4Hp) bf16, (1,4Hp) f32
                   wfc_f_ref, wfc_b_ref, bfc_ref,   # FC head: (Hp,out) f32 x2, (1,out) f32
                   out_ref,                          # (TB, out) f32
                   h_ref, c_ref, xp_ref):            # scratch: (TB,Hp) f32 x2, (t_chunk*TB,4Hp) f32
    t_idx = pl.program_id(1)
    n_t = pl.num_programs(1)

    rows, _ = emb_ref.shape
    TB, Hp = h_ref.shape
    TT = rows // TB                      # time steps in this chunk (static)

    # ---- new batch tile: zero the recurrent carry --------------------------
    @pl.when(t_idx == 0)
    def _():
        h_ref[...] = jnp.zeros_like(h_ref)
        c_ref[...] = jnp.zeros_like(c_ref)

    # ---- (1) hoisted input projection: one big MXU matmul for the chunk ----
    # bias folded in ONCE here (not re-broadcast every timestep).
    xp_ref[...] = (
        jnp.dot(emb_ref[...], wih_f_ref[...], preferred_element_type=jnp.float32)
        + b_f_ref[...])

    whh = whh_f_ref[...]                 # (Hp, 4Hp) bf16, resident across the loop

    def gates_to_hc(gates, c):
        # gates: (TB, 4Hp) f32; each slice is a lane-aligned 128-multiple block.
        i = jax.nn.sigmoid(gates[:, 0 * Hp:1 * Hp])
        f = jax.nn.sigmoid(gates[:, 1 * Hp:2 * Hp])
        g = jnp.tanh(gates[:, 2 * Hp:3 * Hp])
        o = jax.nn.sigmoid(gates[:, 3 * Hp:4 * Hp])
        c_new = f * c + i * g
        h_new = o * jnp.tanh(c_new)
        return h_new, c_new

    # ---- (2) recurrence: only h @ W_hh on the serial path; fully unrolled --
    def step(i, carry):
        h, c = carry
        r0 = pl.multiple_of(i * TB, TB)                      # sublane-aligned
        gates = xp_ref[pl.ds(r0, TB), :] + jnp.dot(
            h.astype(jnp.bfloat16), whh, preferred_element_type=jnp.float32)
        return gates_to_hc(gates, c)

    h_fwd, c_fwd = lax.fori_loop(0, TT, step, (h_ref[...], c_ref[...]),
                                 unroll=True)
    h_ref[...] = h_fwd
    c_ref[...] = c_fwd

    # ---- (3) last chunk: reverse-direction single step + FC + sigmoid ------
    # Reverse output at t=T-1 starts from zero state, so its h @ W_hh term is 0.
    @pl.when(t_idx == n_t - 1)
    def _():
        x_last = emb_ref[(TT - 1) * TB:TT * TB, :]           # (TB, E), static slice
        gates_b = (jnp.dot(x_last, wih_b_ref[...],
                           preferred_element_type=jnp.float32) + b_b_ref[...])
        h_bwd, _ = gates_to_hc(gates_b, jnp.zeros((TB, Hp), jnp.float32))

        logits = (jnp.dot(h_fwd, wfc_f_ref[...], preferred_element_type=jnp.float32)
                  + jnp.dot(h_bwd, wfc_b_ref[...], preferred_element_type=jnp.float32)
                  + bfc_ref[...])
        out_ref[...] = jax.nn.sigmoid(logits)


# ----------------------------------------------------------------------------
# Wrapper
# ----------------------------------------------------------------------------
def _round_up(x, m):
    return (x + m - 1) // m * m


def _pick_t_chunk(T, target=16):
    for c in range(min(T, target), 0, -1):
        if T % c == 0:
            return c
    return T


@functools.partial(jax.jit, static_argnames=("t_chunk", "b_tile"))
def capsule_bilstm_forward(tokens, params, *, t_chunk=None, b_tile=8):
    """tokens: (B, T) int token ids. Returns (B, out_dim) float32 in (0, 1)."""
    B, T = tokens.shape
    E = params["embedding"].shape[1]
    H = params["whh_f"].shape[0]
    out_dim = params["wfc"].shape[1]

    # ---- shape planning -----------------------------------------------------
    assert b_tile % 8 == 0, "b_tile must be a multiple of 8 sublanes"
    TB = b_tile
    Bp = _round_up(max(B, 1), TB)          # pad batch to whole tiles (8 sublanes)
    Hp = _round_up(H, 128)                 # lane-align every gate block
    H4 = 4 * Hp
    if t_chunk is None:
        t_chunk = _pick_t_chunk(T)
    assert T % t_chunk == 0, "t_chunk must divide T"
    nb, nt = Bp // TB, T // t_chunk

    # ---- prepare inputs (all wrapper ops are on tiny tensors) ---------------
    tokens_p = jnp.zeros((Bp, T), jnp.int32).at[:B, :].set(tokens.astype(jnp.int32))
    # Gather directly in (b-tile, time, row-in-tile) order so the kernel gets a
    # flat lane-dense (rows, E) slab: row = ((b * T) + t) * TB + r.
    tok = jnp.transpose(tokens_p.reshape(nb, TB, T), (0, 2, 1))       # (nb, T, TB)
    emb = params["embedding"].astype(jnp.bfloat16)[tok]               # (nb, T, TB, E)
    emb = emb.reshape(nb * T * TB, E)                                  # bf16 MXU operand

    def pad_gate_cols(w, rows_to=None):
        # (in, 4H) -> (rows_to, 4*Hp); zero-padded gate columns keep the padded
        # hidden units exactly inert (c stays 0, h stays 0 for every step).
        inn = w.shape[0]
        rows_to = inn if rows_to is None else rows_to
        w4 = w.reshape(inn, 4, H)
        w4 = jnp.pad(w4, ((0, rows_to - inn), (0, 0), (0, Hp - H)))
        return w4.reshape(rows_to, H4)

    wih_f = pad_gate_cols(params["wih_f"]).astype(jnp.bfloat16)        # (E, 4Hp)
    whh_f = pad_gate_cols(params["whh_f"], Hp).astype(jnp.bfloat16)    # (Hp, 4Hp)
    b_f   = pad_gate_cols(params["b_f"])                               # (1, 4Hp) f32
    wih_b = pad_gate_cols(params["wih_b"]).astype(jnp.bfloat16)        # (E, 4Hp)
    b_b   = pad_gate_cols(params["b_b"])                               # (1, 4Hp) f32
    # params["whh_b"] is deliberately not passed: reverse output at T-1 starts
    # from zero state, so the h @ W_hh_b term is identically zero.

    wfc_f = jnp.pad(params["wfc"][:H], ((0, Hp - H), (0, 0)))          # (Hp, out) f32
    wfc_b = jnp.pad(params["wfc"][H:], ((0, Hp - H), (0, 0)))          # (Hp, out) f32
    bfc   = params["bfc"]                                              # (1, out)  f32

    # ---- grid / block specs --------------------------------------------------
    in_specs = [
        pl.BlockSpec((t_chunk * TB, E), lambda b, t: (b * nt + t, 0)),  # emb chunk
        pl.BlockSpec((E, H4),  lambda b, t: (0, 0)),                    # wih_f
        pl.BlockSpec((Hp, H4), lambda b, t: (0, 0)),                    # whh_f
        pl.BlockSpec((1, H4),  lambda b, t: (0, 0)),                    # b_f
        pl.BlockSpec((E, H4),  lambda b, t: (0, 0)),                    # wih_b
        pl.BlockSpec((1, H4),  lambda b, t: (0, 0)),                    # b_b
        pl.BlockSpec((Hp, out_dim), lambda b, t: (0, 0)),               # wfc_f
        pl.BlockSpec((Hp, out_dim), lambda b, t: (0, 0)),               # wfc_b
        pl.BlockSpec((1, out_dim),  lambda b, t: (0, 0)),               # bfc
    ]
    out_spec = pl.BlockSpec((TB, out_dim), lambda b, t: (b, 0))

    scratch_shapes = [
        pltpu.VMEM((TB, Hp), jnp.float32),                # h carry
        pltpu.VMEM((TB, Hp), jnp.float32),                # c carry
        pltpu.VMEM((t_chunk * TB, H4), jnp.float32),      # hoisted X @ W_ih + b
    ]

    # ---- VMEM budget + cost estimate ----------------------------------------
    bf2, f4 = 2, 4
    block_bytes = (
        2 * (t_chunk * TB * E * bf2)                              # emb (dbl-buffered)
        + 2 * (2 * E * H4 * bf2 + Hp * H4 * bf2 + 2 * H4 * f4
               + 2 * Hp * out_dim * f4 + out_dim * f4)            # weights/biases
        + 2 * (TB * out_dim * f4))                                # output block
    scratch_bytes = (2 * TB * Hp + t_chunk * TB * H4) * f4
    vmem_limit = int(min(max(8 << 20, 2 * (block_bytes + scratch_bytes)), 48 << 20))

    flops = (2 * T * Bp * E * H4            # hoisted input projection
             + 2 * T * Bp * Hp * H4         # recurrent h @ W_hh
             + 2 * Bp * E * H4              # reverse-direction cell
             + 2 * Bp * 2 * Hp * out_dim)   # FC head
    transc = 5 * Bp * Hp * (T + 1) + Bp * out_dim
    bytes_acc = (nb * T * TB * E * bf2
                 + (2 * E * H4 + Hp * H4) * bf2 + 2 * H4 * f4
                 + 2 * Hp * out_dim * f4 + out_dim * f4
                 + Bp * out_dim * f4)

    out_p = pl.pallas_call(
        _bilstm_kernel,
        out_shape=jax.ShapeDtypeStruct((Bp, out_dim), jnp.float32),
        grid_spec=pltpu.PrefetchScalarGridSpec(
            num_scalar_prefetch=0,
            grid=(nb, nt),
            in_specs=in_specs,
            out_specs=out_spec,
            scratch_shapes=scratch_shapes),
        compiler_params=pltpu.CompilerParams(
            dimension_semantics=("parallel", "arbitrary"),   # batch tiles // v7x TCs
            vmem_limit_bytes=vmem_limit),
        cost_estimate=pl.CostEstimate(
            flops=int(flops), transcendentals=int(transc),
            bytes_accessed=int(bytes_acc)),
    )(emb, wih_f, whh_f, b_f, wih_b, b_b, wfc_f, wfc_b, bfc)

    return out_p[:B]


# ----------------------------------------------------------------------------
# Params + pure-JAX reference (f32) for validation
# ----------------------------------------------------------------------------
def init_params(key, vocab_size, embed_dim, hidden_dim, output_dim):
    ks = jax.random.split(key, 10)
    s_lstm = 1.0 / (hidden_dim ** 0.5)
    s_fc = 1.0 / ((2 * hidden_dim) ** 0.5)

    def u(k, shape, s):
        return jax.random.uniform(k, shape, jnp.float32, -s, s)

    emb_table = jax.random.normal(ks[0], (vocab_size, embed_dim), jnp.float32)
    emb_table = emb_table.at[0].set(0.0)                    # padding_idx = 0

    return {
        "embedding": emb_table,
        # forward direction (gate order i, f, g, o), stored as (in, 4H)
        "wih_f": u(ks[1], (embed_dim, 4 * hidden_dim), s_lstm),
        "whh_f": u(ks[2], (hidden_dim, 4 * hidden_dim), s_lstm),
        "b_f":   u(ks[3], (1, 4 * hidden_dim), s_lstm),     # b_ih + b_hh fused
        # backward direction (whh_b kept for module parity; unused by kernel)
        "wih_b": u(ks[4], (embed_dim, 4 * hidden_dim), s_lstm),
        "whh_b": u(ks[5], (hidden_dim, 4 * hidden_dim), s_lstm),
        "b_b":   u(ks[6], (1, 4 * hidden_dim), s_lstm),
        # FC head
        "wfc":   u(ks[7], (2 * hidden_dim, output_dim), s_fc),
        "bfc":   u(ks[8], (1, output_dim), s_fc),
    }


def _reference_forward(tokens, params):
    """Plain f32 JAX reference with the exact PyTorch semantics."""
    emb = params["embedding"][tokens]                       # (B, T, E)
    B, T, _ = emb.shape
    H = params["whh_f"].shape[0]

    def cell(x_t, h, c, wih, whh, b):
        g = x_t @ wih + h @ whh + b
        i = jax.nn.sigmoid(g[:, 0:H])
        f = jax.nn.sigmoid(g[:, H:2 * H])
        gg = jnp.tanh(g[:, 2 * H:3 * H])
        o = jax.nn.sigmoid(g[:, 3 * H:4 * H])
        c = f * c + i * gg
        return o * jnp.tanh(c), c

    h = jnp.zeros((B, H), jnp.float32)
    c = jnp.zeros((B, H), jnp.float32)
    for t in range(T):
        h, c = cell(emb[:, t], h, c, params["wih_f"], params["whh_f"], params["b_f"])
    hb, _ = cell(emb[:, -1], jnp.zeros((B, H)), jnp.zeros((B, H)),
                 params["wih_b"], params["whh_b"], params["b_b"])
    logits = jnp.concatenate([h, hb], axis=-1) @ params["wfc"] + params["bfc"]
    return jax.nn.sigmoid(logits)


# ----------------------------------------------------------------------------
if __name__ == "__main__":
    vocab_size, embed_dim, hidden_dim, output_dim = 20, 16, 32, 4
    B, T = 2, 8

    key = jax.random.PRNGKey(0)
    k_params, k_tokens = jax.random.split(key)
    params = init_params(k_params, vocab_size, embed_dim, hidden_dim, output_dim)
    tokens = jax.random.randint(k_tokens, (B, T), 0, vocab_size, dtype=jnp.int32)

    # t_chunk=4 exercises the multi-chunk carry path (grid = (1 batch tile, 2 chunks)).
    out = capsule_bilstm_forward(tokens, params, t_chunk=4)
    out = jax.block_until_ready(out)

    ref = _reference_forward(tokens, params)

    assert out.shape == (B, output_dim)
    assert bool(jnp.all(jnp.isfinite(out)))
    assert bool(jnp.all((out >= 0.0) & (out <= 1.0)))
    # bf16 MXU operands with f32 accumulation -> small tolerance vs f32 reference.
    assert bool(jnp.allclose(out, ref, atol=2e-2, rtol=0.0)), (out, ref)
    print("KERNEL_OK")
</pallas_src>

<mosaic_0001>
module attributes {stable_mosaic.version = 11 : i64} {
  func.func @_bilstm_kernel(%arg0: i32, %arg1: i32, %arg2: memref<32x16xbf16, #tpu.memory_space<vmem>>, %arg3: memref<16x512xbf16, #tpu.memory_space<vmem>>, %arg4: memref<128x512xbf16, #tpu.memory_space<vmem>>, %arg5: memref<1x512xf32, #tpu.memory_space<vmem>>, %arg6: memref<16x512xbf16, #tpu.memory_space<vmem>>, %arg7: memref<1x512xf32, #tpu.memory_space<vmem>>, %arg8: memref<128x4xf32, #tpu.memory_space<vmem>>, %arg9: memref<128x4xf32, #tpu.memory_space<vmem>>, %arg10: memref<1x4xf32, #tpu.memory_space<vmem>>, %arg11: memref<8x4xf32, #tpu.memory_space<vmem>>, %arg12: memref<8x128xf32, #tpu.memory_space<vmem>>, %arg13: memref<8x128xf32, #tpu.memory_space<vmem>>, %arg14: memref<32x512xf32, #tpu.memory_space<vmem>>) attributes {dimension_semantics = [#tpu.dimension_semantics<parallel>, #tpu.dimension_semantics<arbitrary>], iteration_bounds = array<i64: 1, 2>, scalar_prefetch = 0 : i64, scratch_operands = 3 : i64, tpu.core_type = #tpu.core_type<tc>, window_params = [{transform_indices = @transform_0, window_bounds = array<i64: 32, 16>}, {pipeline_mode = #tpu.pipeline_mode<synchronous>, transform_indices = @transform_1, window_bounds = array<i64: 16, 512>}, {pipeline_mode = #tpu.pipeline_mode<synchronous>, transform_indices = @transform_2, window_bounds = array<i64: 128, 512>}, {pipeline_mode = #tpu.pipeline_mode<synchronous>, transform_indices = @transform_3, window_bounds = array<i64: 1, 512>}, {pipeline_mode = #tpu.pipeline_mode<synchronous>, transform_indices = @transform_4, window_bounds = array<i64: 16, 512>}, {pipeline_mode = #tpu.pipeline_mode<synchronous>, transform_indices = @transform_5, window_bounds = array<i64: 1, 512>}, {pipeline_mode = #tpu.pipeline_mode<synchronous>, transform_indices = @transform_6, window_bounds = array<i64: 128, 4>}, {pipeline_mode = #tpu.pipeline_mode<synchronous>, transform_indices = @transform_7, window_bounds = array<i64: 128, 4>}, {pipeline_mode = #tpu.pipeline_mode<synchronous>, transform_indices = @transform_8, window_bounds = array<i64: 1, 4>}, {transform_indices = @transform_9, window_bounds = array<i64: 8, 4>}]} {
    %c0_i32 = arith.constant 0 : i32
    %0 = arith.cmpi eq, %arg1, %c0_i32 : i32
    %1 = arith.extui %0 : i1 to i32
    %c0_i32_0 = arith.constant 0 : i32
    %2 = arith.cmpi ne, %1, %c0_i32_0 : i32
    scf.if %2 {
      %cst_44 = arith.constant 0.000000e+00 : f32
      %146 = vector.broadcast %cst_44 : f32 to vector<8x128xf32>
      %c0_45 = arith.constant 0 : index
      %c0_46 = arith.constant 0 : index
      %147 = vector.load %arg12[%c0_45, %c0_46] : memref<8x128xf32, #tpu.memory_space<vmem>>, vector<8x128xf32>
      tpu.vector_store %arg12[%c0_45, %c0_46], %146 {strides = array<i32>} : memref<8x128xf32, #tpu.memory_space<vmem>>, vector<8x128xf32>,
      %cst_47 = arith.constant 0.000000e+00 : f32
      %148 = vector.broadcast %cst_47 : f32 to vector<8x128xf32>
      %c0_48 = arith.constant 0 : index
      %c0_49 = arith.constant 0 : index
      %149 = vector.load %arg13[%c0_48, %c0_49] : memref<8x128xf32, #tpu.memory_space<vmem>>, vector<8x128xf32>
      tpu.vector_store %arg13[%c0_48, %c0_49], %148 {strides = array<i32>} : memref<8x128xf32, #tpu.memory_space<vmem>>, vector<8x128xf32>,
    } else {
    }
    %c0 = arith.constant 0 : index
    %c0_1 = arith.constant 0 : index
    %3 = vector.load %arg2[%c0, %c0_1] : memref<32x16xbf16, #tpu.memory_space<vmem>>, vector<32x16xbf16>
    %c0_2 = arith.constant 0 : index
    %c0_3 = arith.constant 0 : index
    %4 = vector.load %arg3[%c0_2, %c0_3] : memref<16x512xbf16, #tpu.memory_space<vmem>>, vector<16x512xbf16>
    %cst = arith.constant dense<0.000000e+00> : vector<32x512xf32>
    %5 = tpu.matmul %3, %4, %cst {dimension_numbers = #tpu.dot_dimension_numbers<[1], [0], [0], [1], [0, 0, 1, 1], [], []>} : vector<32x16xbf16>, vector<16x512xbf16>, vector<32x512xf32> -> vector<32x512xf32>
    %c0_4 = arith.constant 0 : index
    %c0_5 = arith.constant 0 : index
    %6 = vector.load %arg5[%c0_4, %c0_5] : memref<1x512xf32, #tpu.memory_space<vmem>>, vector<1x512xf32>
    %7 = vector.broadcast %6 : vector<1x512xf32> to vector<32x512xf32>
    %8 = arith.addf %5, %7 : vector<32x512xf32>
    %c0_6 = arith.constant 0 : index
    %c0_7 = arith.constant 0 : index
    %9 = vector.load %arg14[%c0_6, %c0_7] : memref<32x512xf32, #tpu.memory_space<vmem>>, vector<32x512xf32>
    tpu.vector_store %arg14[%c0_6, %c0_7], %8 {strides = array<i32>} : memref<32x512xf32, #tpu.memory_space<vmem>>, vector<32x512xf32>,
    %c0_8 = arith.constant 0 : index
    %c0_9 = arith.constant 0 : index
    %10 = vector.load %arg4[%c0_8, %c0_9] : memref<128x512xbf16, #tpu.memory_space<vmem>>, vector<128x512xbf16>
    %c0_10 = arith.constant 0 : index
    %c0_11 = arith.constant 0 : index
    %11 = vector.load %arg12[%c0_10, %c0_11] : memref<8x128xf32, #tpu.memory_space<vmem>>, vector<8x128xf32>
    %c0_12 = arith.constant 0 : index
    %c0_13 = arith.constant 0 : index
    %12 = vector.load %arg13[%c0_12, %c0_13] : memref<8x128xf32, #tpu.memory_space<vmem>>, vector<8x128xf32>
    %c0_i32_14 = arith.constant 0 : i32
    %c8_i32 = arith.constant 8 : i32
    %13 = arith.muli %c0_i32_14, %c8_i32 : i32
    %14 = tpu.assume_multiple %13, 8 : i32
    %15 = arith.index_cast %14 : i32 to index
    %c0_15 = arith.constant 0 : index
    %16 = vector.load %arg14[%15, %c0_15] : memref<32x512xf32, #tpu.memory_space<vmem>>, vector<8x512xf32>
    %17 = arith.truncf %11 : vector<8x128xf32> to vector<8x128xbf16>
    %cst_16 = arith.constant dense<0.000000e+00> : vector<8x512xf32>
    %18 = tpu.matmul %17, %10, %cst_16 {dimension_numbers = #tpu.dot_dimension_numbers<[1], [0], [0], [1], [0, 0, 1, 1], [], []>} : vector<8x128xbf16>, vector<128x512xbf16>, vector<8x512xf32> -> vector<8x512xf32>
    %19 = arith.addf %16, %18 : vector<8x512xf32>
    %20 = vector.extract_strided_slice %19 {offsets = [0, 0], sizes = [8, 128], strides = [1, 1]} : vector<8x512xf32> to vector<8x128xf32>
    %21 = arith.negf %20 : vector<8x128xf32>
    %22 = math.exp %21 : vector<8x128xf32>
    %cst_17 = arith.constant 1.000000e+00 : f32
    %23 = vector.broadcast %cst_17 : f32 to vector<8x128xf32>
    %24 = arith.addf %23, %22 : vector<8x128xf32>
    %25 = arith.divf %23, %24 : vector<8x128xf32>
    %26 = vector.extract_strided_slice %19 {offsets = [0, 128], sizes = [8, 128], strides = [1, 1]} : vector<8x512xf32> to vector<8x128xf32>
    %27 = arith.negf %26 : vector<8x128xf32>
    %28 = math.exp %27 : vector<8x128xf32>
    %cst_18 = arith.constant 1.000000e+00 : f32
    %29 = vector.broadcast %cst_18 : f32 to vector<8x128xf32>
    %30 = arith.addf %29, %28 : vector<8x128xf32>
    %31 = arith.divf %29, %30 : vector<8x128xf32>
    %32 = vector.extract_strided_slice %19 {offsets = [0, 256], sizes = [8, 128], strides = [1, 1]} : vector<8x512xf32> to vector<8x128xf32>
    %33 = math.tanh %32 : vector<8x128xf32>
    %34 = vector.extract_strided_slice %19 {offsets = [0, 384], sizes = [8, 128], strides = [1, 1]} : vector<8x512xf32> to vector<8x128xf32>
    %35 = arith.negf %34 : vector<8x128xf32>
    %36 = math.exp %35 : vector<8x128xf32>
    %cst_19 = arith.constant 1.000000e+00 : f32
    %37 = vector.broadcast %cst_19 : f32 to vector<8x128xf32>
    %38 = arith.addf %37, %36 : vector<8x128xf32>
    %39 = arith.divf %37, %38 : vector<8x128xf32>
    %40 = arith.mulf %31, %12 : vector<8x128xf32>
    %41 = arith.mulf %25, %33 : vector<8x128xf32>
    %42 = arith.addf %40, %41 : vector<8x128xf32>
    %43 = math.tanh %42 : vector<8x128xf32>
    %44 = arith.mulf %39, %43 : vector<8x128xf32>
    %c1_i32 = arith.constant 1 : i32
    %c8_i32_20 = arith.constant 8 : i32
    %45 = arith.muli %c1_i32, %c8_i32_20 : i32
    %46 = tpu.assume_multiple %45, 8 : i32
    %47 = arith.index_cast %46 : i32 to index
    %c0_21 = arith.constant 0 : index
    %48 = vector.load %arg14[%47, %c0_21] : memref<32x512xf32, #tpu.memory_space<vmem>>, vector<8x512xf32>
    %49 = arith.truncf %44 : vector<8x128xf32> to vector<8x128xbf16>
    %cst_22 = arith.constant dense<0.000000e+00> : vector<8x512xf32>
    %50 = tpu.matmul %49, %10, %cst_22 {dimension_numbers = #tpu.dot_dimension_numbers<[1], [0], [0], [1], [0, 0, 1, 1], [], []>} : vector<8x128xbf16>, vector<128x512xbf16>, vector<8x512xf32> -> vector<8x512xf32>
    %51 = arith.addf %48, %50 : vector<8x512xf32>
    %52 = vector.extract_strided_slice %51 {offsets = [0, 0], sizes = [8, 128], strides = [1, 1]} : vector<8x512xf32> to vector<8x128xf32>
    %53 = arith.negf %52 : vector<8x128xf32>
    %54 = math.exp %53 : vector<8x128xf32>
    %cst_23 = arith.constant 1.000000e+00 : f32
    %55 = vector.broadcast %cst_23 : f32 to vector<8x128xf32>
    %56 = arith.addf %55, %54 : vector<8x128xf32>
    %57 = arith.divf %55, %56 : vector<8x128xf32>
    %58 = vector.extract_strided_slice %51 {offsets = [0, 128], sizes = [8, 128], strides = [1, 1]} : vector<8x512xf32> to vector<8x128xf32>
    %59 = arith.negf %58 : vector<8x128xf32>
    %60 = math.exp %59 : vector<8x128xf32>
    %cst_24 = arith.constant 1.000000e+00 : f32
    %61 = vector.broadcast %cst_24 : f32 to vector<8x128xf32>
    %62 = arith.addf %61, %60 : vector<8x128xf32>
    %63 = arith.divf %61, %62 : vector<8x128xf32>
    %64 = vector.extract_strided_slice %51 {offsets = [0, 256], sizes = [8, 128], strides = [1, 1]} : vector<8x512xf32> to vector<8x128xf32>
    %65 = math.tanh %64 : vector<8x128xf32>
    %66 = vector.extract_strided_slice %51 {offsets = [0, 384], sizes = [8, 128], strides = [1, 1]} : vector<8x512xf32> to vector<8x128xf32>
    %67 = arith.negf %66 : vector<8x128xf32>
    %68 = math.exp %67 : vector<8x128xf32>
    %cst_25 = arith.constant 1.000000e+00 : f32
    %69 = vector.broadcast %cst_25 : f32 to vector<8x128xf32>
    %70 = arith.addf %69, %68 : vector<8x128xf32>
    %71 = arith.divf %69, %70 : vector<8x128xf32>
    %72 = arith.mulf %63, %42 : vector<8x128xf32>
    %73 = arith.mulf %57, %65 : vector<8x128xf32>
    %74 = arith.addf %72, %73 : vector<8x128xf32>
    %75 = math.tanh %74 : vector<8x128xf32>
    %76 = arith.mulf %71, %75 : vector<8x128xf32>
    %c2_i32 = arith.constant 2 : i32
    %c8_i32_26 = arith.constant 8 : i32
    %77 = arith.muli %c2_i32, %c8_i32_26 : i32
    %78 = tpu.assume_multiple %77, 8 : i32
    %79 = arith.index_cast %78 : i32 to index
    %c0_27 = arith.constant 0 : index
    %80 = vector.load %arg14[%79, %c0_27] : memref<32x512xf32, #tpu.memory_space<vmem>>, vector<8x512xf32>
    %81 = arith.truncf %76 : vector<8x128xf32> to vector<8x128xbf16>
    %cst_28 = arith.constant dense<0.000000e+00> : vector<8x512xf32>
    %82 = tpu.matmul %81, %10, %cst_28 {dimension_numbers = #tpu.dot_dimension_numbers<[1], [0], [0], [1], [0, 0, 1, 1], [], []>} : vector<8x128xbf16>, vector<128x512xbf16>, vector<8x512xf32> -> vector<8x512xf32>
    %83 = arith.addf %80, %82 : vector<8x512xf32>
    %84 = vector.extract_strided_slice %83 {offsets = [0, 0], sizes = [8, 128], strides = [1, 1]} : vector<8x512xf32> to vector<8x128xf32>
    %85 = arith.negf %84 : vector<8x128xf32>
    %86 = math.exp %85 : vector<8x128xf32>
    %cst_29 = arith.constant 1.000000e+00 : f32
    %87 = vector.broadcast %cst_29 : f32 to vector<8x128xf32>
    %88 = arith.addf %87, %86 : vector<8x128xf32>
    %89 = arith.divf %87, %88 : vector<8x128xf32>
    %90 = vector.extract_strided_slice %83 {offsets = [0, 128], sizes = [8, 128], strides = [1, 1]} : vector<8x512xf32> to vector<8x128xf32>
    %91 = arith.negf %90 : vector<8x128xf32>
    %92 = math.exp %91 : vector<8x128xf32>
    %cst_30 = arith.constant 1.000000e+00 : f32
    %93 = vector.broadcast %cst_30 : f32 to vector<8x128xf32>
    %94 = arith.addf %93, %92 : vector<8x128xf32>
    %95 = arith.divf %93, %94 : vector<8x128xf32>
    %96 = vector.extract_strided_slice %83 {offsets = [0, 256], sizes = [8, 128], strides = [1, 1]} : vector<8x512xf32> to vector<8x128xf32>
    %97 = math.tanh %96 : vector<8x128xf32>
    %98 = vector.extract_strided_slice %83 {offsets = [0, 384], sizes = [8, 128], strides = [1, 1]} : vector<8x512xf32> to vector<8x128xf32>
    %99 = arith.negf %98 : vector<8x128xf32>
    %100 = math.exp %99 : vector<8x128xf32>
    %cst_31 = arith.constant 1.000000e+00 : f32
    %101 = vector.broadcast %cst_31 : f32 to vector<8x128xf32>
    %102 = arith.addf %101, %100 : vector<8x128xf32>
    %103 = arith.divf %101, %102 : vector<8x128xf32>
    %104 = arith.mulf %95, %74 : vector<8x128xf32>
    %105 = arith.mulf %89, %97 : vector<8x128xf32>
    %106 = arith.addf %104, %105 : vector<8x128xf32>
    %107 = math.tanh %106 : vector<8x128xf32>
    %108 = arith.mulf %103, %107 : vector<8x128xf32>
    %c3_i32 = arith.constant 3 : i32
    %c8_i32_32 = arith.constant 8 : i32
    %109 = arith.muli %c3_i32, %c8_i32_32 : i32
    %110 = tpu.assume_multiple %109, 8 : i32
    %111 = arith.index_cast %110 : i32 to index
    %c0_33 = arith.constant 0 : index
    %112 = vector.load %arg14[%111, %c0_33] : memref<32x512xf32, #tpu.memory_space<vmem>>, vector<8x512xf32>
    %113 = arith.truncf %108 : vector<8x128xf32> to vector<8x128xbf16>
    %cst_34 = arith.constant dense<0.000000e+00> : vector<8x512xf32>
    %114 = tpu.matmul %113, %10, %cst_34 {dimension_numbers = #tpu.dot_dimension_numbers<[1], [0], [0], [1], [0, 0, 1, 1], [], []>} : vector<8x128xbf16>, vector<128x512xbf16>, vector<8x512xf32> -> vector<8x512xf32>
    %115 = arith.addf %112, %114 : vector<8x512xf32>
    %116 = vector.extract_strided_slice %115 {offsets = [0, 0], sizes = [8, 128], strides = [1, 1]} : vector<8x512xf32> to vector<8x128xf32>
    %117 = arith.negf %116 : vector<8x128xf32>
    %118 = math.exp %117 : vector<8x128xf32>
    %cst_35 = arith.constant 1.000000e+00 : f32
    %119 = vector.broadcast %cst_35 : f32 to vector<8x128xf32>
    %120 = arith.addf %119, %118 : vector<8x128xf32>
    %121 = arith.divf %119, %120 : vector<8x128xf32>
    %122 = vector.extract_strided_slice %115 {offsets = [0, 128], sizes = [8, 128], strides = [1, 1]} : vector<8x512xf32> to vector<8x128xf32>
    %123 = arith.negf %122 : vector<8x128xf32>
    %124 = math.exp %123 : vector<8x128xf32>
    %cst_36 = arith.constant 1.000000e+00 : f32
    %125 = vector.broadcast %cst_36 : f32 to vector<8x128xf32>
    %126 = arith.addf %125, %124 : vector<8x128xf32>
    %127 = arith.divf %125, %126 : vector<8x128xf32>
    %128 = vector.extract_strided_slice %115 {offsets = [0, 256], sizes = [8, 128], strides = [1, 1]} : vector<8x512xf32> to vector<8x128xf32>
    %129 = math.tanh %128 : vector<8x128xf32>
    %130 = vector.extract_strided_slice %115 {offsets = [0, 384], sizes = [8, 128], strides = [1, 1]} : vector<8x512xf32> to vector<8x128xf32>
    %131 = arith.negf %130 : vector<8x128xf32>
    %132 = math.exp %131 : vector<8x128xf32>
    %cst_37 = arith.constant 1.000000e+00 : f32
    %133 = vector.broadcast %cst_37 : f32 to vector<8x128xf32>
    %134 = arith.addf %133, %132 : vector<8x128xf32>
    %135 = arith.divf %133, %134 : vector<8x128xf32>
    %136 = arith.mulf %127, %106 : vector<8x128xf32>
    %137 = arith.mulf %121, %129 : vector<8x128xf32>
    %138 = arith.addf %136, %137 : vector<8x128xf32>
    %139 = math.tanh %138 : vector<8x128xf32>
    %140 = arith.mulf %135, %139 : vector<8x128xf32>
    %c4_i32 = arith.constant 4 : i32
    %c0_38 = arith.constant 0 : index
    %c0_39 = arith.constant 0 : index
    %141 = vector.load %arg12[%c0_38, %c0_39] : memref<8x128xf32, #tpu.memory_space<vmem>>, vector<8x128xf32>
    tpu.vector_store %arg12[%c0_38, %c0_39], %140 {strides = array<i32>} : memref<8x128xf32, #tpu.memory_space<vmem>>, vector<8x128xf32>,
    %c0_40 = arith.constant 0 : index
    %c0_41 = arith.constant 0 : index
    %142 = vector.load %arg13[%c0_40, %c0_41] : memref<8x128xf32, #tpu.memory_space<vmem>>, vector<8x128xf32>
    tpu.vector_store %arg13[%c0_40, %c0_41], %138 {strides = array<i32>} : memref<8x128xf32, #tpu.memory_space<vmem>>, vector<8x128xf32>,
    %c1_i32_42 = arith.constant 1 : i32
    %143 = arith.cmpi eq, %arg1, %c1_i32_42 : i32
    %144 = arith.extui %143 : i1 to i32
    %c0_i32_43 = arith.constant 0 : i32
    %145 = arith.cmpi ne, %144, %c0_i32_43 : i32
    scf.if %145 {
      %c24 = arith.constant 24 : index
      %c0_44 = arith.constant 0 : index
      %146 = vector.load %arg2[%c24, %c0_44] : memref<32x16xbf16, #tpu.memory_space<vmem>>, vector<8x16xbf16>
      %c0_45 = arith.constant 0 : index
      %c0_46 = arith.constant 0 : index
      %147 = vector.load %arg6[%c0_45, %c0_46] : memref<16x512xbf16, #tpu.memory_space<vmem>>, vector<16x512xbf16>
      %cst_47 = arith.constant dense<0.000000e+00> : vector<8x512xf32>
      %148 = tpu.matmul %146, %147, %cst_47 {dimension_numbers = #tpu.dot_dimension_numbers<[1], [0], [0], [1], [0, 0, 1, 1], [], []>} : vector<8x16xbf16>, vector<16x512xbf16>, vector<8x512xf32> -> vector<8x512xf32>
      %c0_48 = arith.constant 0 : index
      %c0_49 = arith.constant 0 : index
      %149 = vector.load %arg7[%c0_48, %c0_49] : memref<1x512xf32, #tpu.memory_space<vmem>>, vector<1x512xf32>
      %150 = vector.broadcast %149 : vector<1x512xf32> to vector<8x512xf32>
      %151 = arith.addf %148, %150 : vector<8x512xf32>
      %cst_50 = arith.constant 0.000000e+00 : f32
      %152 = vector.broadcast %cst_50 : f32 to vector<8x128xf32>
      %153 = vector.extract_strided_slice %151 {offsets = [0, 0], sizes = [8, 128], strides = [1, 1]} : vector<8x512xf32> to vector<8x128xf32>
      %154 = arith.negf %153 : vector<8x128xf32>
      %155 = math.exp %154 : vector<8x128xf32>
      %cst_51 = arith.constant 1.000000e+00 : f32
      %156 = vector.broadcast %cst_51 : f32 to vector<8x128xf32>
      %157 = arith.addf %156, %155 : vector<8x128xf32>
      %158 = arith.divf %156, %157 : vector<8x128xf32>
      %159 = vector.extract_strided_slice %151 {offsets = [0, 128], sizes = [8, 128], strides = [1, 1]} : vector<8x512xf32> to vector<8x128xf32>
      %160 = arith.negf %159 : vector<8x128xf32>
      %161 = math.exp %160 : vector<8x128xf32>
      %cst_52 = arith.constant 1.000000e+00 : f32
      %162 = vector.broadcast %cst_52 : f32 to vector<8x128xf32>
      %163 = arith.addf %162, %161 : vector<8x128xf32>
      %164 = arith.divf %162, %163 : vector<8x128xf32>
      %165 = vector.extract_strided_slice %151 {offsets = [0, 256], sizes = [8, 128], strides = [1, 1]} : vector<8x512xf32> to vector<8x128xf32>
      %166 = math.tanh %165 : vector<8x128xf32>
      %167 = vector.extract_strided_slice %151 {offsets = [0, 384], sizes = [8, 128], strides = [1, 1]} : vector<8x512xf32> to vector<8x128xf32>
      %168 = arith.negf %167 : vector<8x128xf32>
      %169 = math.exp %168 : vector<8x128xf32>
      %cst_53 = arith.constant 1.000000e+00 : f32
      %170 = vector.broadcast %cst_53 : f32 to vector<8x128xf32>
      %171 = arith.addf %170, %169 : vector<8x128xf32>
      %172 = arith.divf %170, %171 : vector<8x128xf32>
      %173 = arith.mulf %164, %152 : vector<8x128xf32>
      %174 = arith.mulf %158, %166 : vector<8x128xf32>
      %175 = arith.addf %173, %174 : vector<8x128xf32>
      %176 = math.tanh %175 : vector<8x128xf32>
      %177 = arith.mulf %172, %176 : vector<8x128xf32>
      %c0_54 = arith.constant 0 : index
      %c0_55 = arith.constant 0 : index
      %178 = vector.load %arg8[%c0_54, %c0_55] : memref<128x4xf32, #tpu.memory_space<vmem>>, vector<128x4xf32>
      %cst_56 = arith.constant dense<0.000000e+00> : vector<8x4xf32>
      %179 = tpu.matmul %140, %178, %cst_56 {dimension_numbers = #tpu.dot_dimension_numbers<[1], [0], [0], [1], [0, 0, 1, 1], [], []>} : vector<8x128xf32>, vector<128x4xf32>, vector<8x4xf32> -> vector<8x4xf32>
      %c0_57 = arith.constant 0 : index
      %c0_58 = arith.constant 0 : index
      %180 = vector.load %arg9[%c0_57, %c0_58] : memref<128x4xf32, #tpu.memory_space<vmem>>, vector<128x4xf32>
      %cst_59 = arith.constant dense<0.000000e+00> : vector<8x4xf32>
      %181 = tpu.matmul %177, %180, %cst_59 {dimension_numbers = #tpu.dot_dimension_numbers<[1], [0], [0], [1], [0, 0, 1, 1], [], []>} : vector<8x128xf32>, vector<128x4xf32>, vector<8x4xf32> -> vector<8x4xf32>
      %182 = arith.addf %179, %181 : vector<8x4xf32>
      %c0_60 = arith.constant 0 : index
      %c0_61 = arith.constant 0 : index
      %183 = vector.load %arg10[%c0_60, %c0_61] : memref<1x4xf32, #tpu.memory_space<vmem>>, vector<1x4xf32>
      %184 = vector.broadcast %183 : vector<1x4xf32> to vector<8x4xf32>
      %185 = arith.addf %182, %184 : vector<8x4xf32>
      %186 = arith.negf %185 : vector<8x4xf32>
      %187 = math.exp %186 : vector<8x4xf32>
      %cst_62 = arith.constant 1.000000e+00 : f32
      %188 = vector.broadcast %cst_62 : f32 to vector<8x4xf32>
      %189 = arith.addf %188, %187 : vector<8x4xf32>
      %190 = arith.divf %188, %189 : vector<8x4xf32>
      %c0_63 = arith.constant 0 : index
      %c0_64 = arith.constant 0 : index
      %191 = vector.load %arg11[%c0_63, %c0_64] : memref<8x4xf32, #tpu.memory_space<vmem>>, vector<8x4xf32>
      tpu.vector_store %arg11[%c0_63, %c0_64], %190 {strides = array<i32>} : memref<8x4xf32, #tpu.memory_space<vmem>>, vector<8x4xf32>,
    } else {
    }
    return
  }
  func.func @transform_0(%arg0: i32, %arg1: i32) -> (i32, i32) {
    %c2_i32 = arith.constant 2 : i32
    %0 = arith.muli %arg0, %c2_i32 : i32
    %1 = arith.addi %0, %arg1 : i32
    %c0_i32 = arith.constant 0 : i32
    %c0_i32_0 = arith.constant 0 : i32
    return %1, %c0_i32 : i32, i32
  }
  func.func @transform_1(%arg0: i32, %arg1: i32) -> (i32, i32) {
    %c0_i32 = arith.constant 0 : i32
    %c0_i32_0 = arith.constant 0 : i32
    %c0_i32_1 = arith.constant 0 : i32
    return %c0_i32, %c0_i32_0 : i32, i32
  }
  func.func @transform_2(%arg0: i32, %arg1: i32) -> (i32, i32) {
    %c0_i32 = arith.constant 0 : i32
    %c0_i32_0 = arith.constant 0 : i32
    %c0_i32_1 = arith.constant 0 : i32
    return %c0_i32, %c0_i32_0 : i32, i32
  }
  func.func @transform_3(%arg0: i32, %arg1: i32) -> (i32, i32) {
    %c0_i32 = arith.constant 0 : i32
    %c0_i32_0 = arith.constant 0 : i32
    %c0_i32_1 = arith.constant 0 : i32
    return %c0_i32, %c0_i32_0 : i32, i32
  }
  func.func @transform_4(%arg0: i32, %arg1: i32) -> (i32, i32) {
    %c0_i32 = arith.constant 0 : i32
    %c0_i32_0 = arith.constant 0 : i32
    %c0_i32_1 = arith.constant 0 : i32
    return %c0_i32, %c0_i32_0 : i32, i32
  }
  func.func @transform_5(%arg0: i32, %arg1: i32) -> (i32, i32) {
    %c0_i32 = arith.constant 0 : i32
    %c0_i32_0 = arith.constant 0 : i32
    %c0_i32_1 = arith.constant 0 : i32
    return %c0_i32, %c0_i32_0 : i32, i32
  }
  func.func @transform_6(%arg0: i32, %arg1: i32) -> (i32, i32) {
    %c0_i32 = arith.constant 0 : i32
    %c0_i32_0 = arith.constant 0 : i32
    %c0_i32_1 = arith.constant 0 : i32
    return %c0_i32, %c0_i32_0 : i32, i32
  }
  func.func @transform_7(%arg0: i32, %arg1: i32) -> (i32, i32) {
    %c0_i32 = arith.constant 0 : i32
    %c0_i32_0 = arith.constant 0 : i32
    %c0_i32_1 = arith.constant 0 : i32
    return %c0_i32, %c0_i32_0 : i32, i32
  }
  func.func @transform_8(%arg0: i32, %arg1: i32) -> (i32, i32) {
    %c0_i32 = arith.constant 0 : i32
    %c0_i32_0 = arith.constant 0 : i32
    %c0_i32_1 = arith.constant 0 : i32
    return %c0_i32, %c0_i32_0 : i32, i32
  }
  func.func @transform_9(%arg0: i32, %arg1: i32) -> (i32, i32) {
    %c0_i32 = arith.constant 0 : i32
    %c0_i32_0 = arith.constant 0 : i32
    return %arg0, %c0_i32 : i32, i32
  }
}

</mosaic_0001>

<llo_original>
// kernel: capsule_bilstm_forward.1
$region0: #{capsule_bilstm_forward.1}
  #allocation0 [shape = 'u32[]', space=smem, size = 0x4, offset = 0x4, fixed_abs, tag = 'smem constant byte address 0x4 - core index']
  #allocation1 [shape = 'u32[144,128]{1,0:T(1,128)}', space=vmem, size = 0x12000, scoped, tag = 'internal scratch']
  #allocation2 [shape = 'f32[8,128]{1,0:T(8,128)}', space=vmem, size = 0x1000, scoped, tag = 'scratch operand']
  #allocation3 [shape = 'f32[8,128]{1,0:T(8,128)}', space=vmem, size = 0x1000, scoped, tag = 'scratch operand']
  #allocation4 [shape = 'f32[32,512]{1,0:T(8,128)}', space=vmem, size = 0x10000, scoped, tag = 'scratch operand']
  %s0 = inlined_call_operand.vmem [shape: bf16[64,16], index: 0, kind: input, shape index: {}]
  %s1 = inlined_call_operand.vmem [shape: bf16[16,512], index: 1, kind: input, shape index: {}]
  %s2 = inlined_call_operand.vmem [shape: bf16[128,512], index: 2, kind: input, shape index: {}]
  %s3 = inlined_call_operand.vmem [shape: f32[1,512], index: 3, kind: input, shape index: {}]
  %s4 = inlined_call_operand.vmem [shape: bf16[16,512], index: 4, kind: input, shape index: {}]
  %s5 = inlined_call_operand.vmem [shape: f32[1,512], index: 5, kind: input, shape index: {}]
  %s6 = inlined_call_operand.vmem [shape: f32[128,4], index: 6, kind: input, shape index: {}]
  %s7 = inlined_call_operand.vmem [shape: f32[128,4], index: 7, kind: input, shape index: {}]
  %s8 = inlined_call_operand.vmem [shape: f32[1,4], index: 8, kind: input, shape index: {}]
  %s9 = inlined_call_operand.vmem [shape: f32[8,4], index: 9, kind: output, shape index: {}]
  %s10 = sld [smem:[#allocation0]]
  $region77: #{capsule_bilstm_forward.1} parent=0
    _
  %s12 = ssub.s32 1, %s10
  %s13 = scalar_select 0, %s12, %s10
  loop: start=0, step=1, limit=4
  $region2: #{capsule_bilstm_forward.1} parent=0 // loop_pre_header
    _
  $region3: #{capsule_bilstm_forward.1} parent=0 // loop_header
    %s15 = sphi 0, %s19
    %p16 = scmp.ge.s32.totalorder %s15, 4
    %s22 = sphi 0, %s34
    %s23 = sphi 0, %s30
    %s24 = sphi 0, %s22
    %s25 = sphi 0, %s23
    %s26 = sphi 0, %s24
    %s27 = sphi 0, %s25
    %s41 = sphi 0, %s43
    %s44 = sphi 0, %s41
    %s45 = sphi 0, %s44
    %s61 = sphi 0, %s45
    %s65 = sphi 0, %s65
    %s67 = sphi 0, %s65
    %s68 = sphi 0, %s67
    %s82 = sphi 0, %s68
    %s86 = sphi 0, %s86
    %s88 = sphi 0, %s86
    %s89 = sphi 0, %s88
    %s103 = sphi 0, %s89
    %s107 = sphi 0, %s107
    %s109 = sphi 0, %s107
    %s110 = sphi 0, %s109
    %s124 = sphi 0, %s110
    %s128 = sphi 0, %s128
    %s130 = sphi 0, %s128
    %s131 = sphi 0, %s130
    %s145 = sphi 0, %s131
    %s149 = sphi 0, %s149
    %s151 = sphi 0, %s149
    %s152 = sphi 0, %s151
    %s166 = sphi 0, %s152
    %s170 = sphi 0, %s170
    %s172 = sphi 0, %s170
    %s173 = sphi 0, %s172
    %s187 = sphi 0, %s173
    %s191 = sphi 0, %s191
    %s193 = sphi 0, %s191
    %s194 = sphi 0, %s193
    %s208 = sphi 0, %s194
    %s212 = sphi 0, %s212
    %s214 = sphi 0, %s212
    %s215 = sphi 0, %s214
    %s229 = sphi 0, %s215
    %s235 = sphi 0, %s237
    %s238 = sphi 0, %s235
    %s239 = sphi 0, %s238
    %s255 = sphi 0, %s239
  $region4: #{capsule_bilstm_forward.1} parent=0 // loop_header_branch
    %18 = sbr.rel (%p16) target = $region8
  $region5: #{capsule_bilstm_forward.1} parent=0 // loop_body
    %s20 = ssub.s32 %s15, 1
    %s21 = ssub.s32 %s15, 2
    %s28 = sadd.s32 1, %s23
    %p29 = scmp.ge.s32.totalorder %s28, 2
    %s30 = scalar_select %p29, 0, %s28
    %s31 = sadd.s32 1, %s22
    %s32 = scalar_select %p29, %s31, %s22
    %p33 = scmp.ge.s32.totalorder %s32, 1
    %s34 = scalar_select %p33, 0, %s32
    %s35 = smul.u32 %s22, 2
    %s36 = sadd.s32 %s35, %s23
    %s37 = smul.u32 %s34, 2
    %s38 = sadd.s32 %s37, %s30
    %s39 = ssub.s32 %s36, %s38
    %p40 = scmp.eq.s32.totalorder %s39, 0
    %s42 = sadd.s32 %s41, 1
    %s43 = scalar_select %p40, %s41, %s42
    %p46 = pneg %p40
    %p47 = scmp.eq.s32.totalorder %s15, 1
    %p48 = por %p46, %p47
    %p49 = scmp.ne.s32.totalorder %s41, %s44
    %p50 = scmp.eq.s32.totalorder %s15, 0
    %p51 = por %p49, %p50
    %p52 = scmp.ne.s32.totalorder %s41, %s44
    %p53 = scmp.eq.s32.totalorder %s20, 1
    %p54 = por %p52, %p53
    %p55 = scmp.ne.s32.totalorder %s44, %s45
    %p56 = scmp.eq.s32.totalorder %s20, 0
    %p57 = por %p55, %p56
    %p58 = scmp.ne.s32.totalorder %s44, %s45
    %p59 = scmp.eq.s32.totalorder %s21, 1
    %p60 = por %p58, %p59
    %p62 = scmp.ne.s32.totalorder %s45, %s61
    %p63 = scmp.eq.s32.totalorder %s21, 0
    %p64 = por %p62, %p63
    %s66 = sadd.s32 %s65, 1
    %p69 = scmp.eq.s32.totalorder %s15, 1
    %p70 = scmp.ne.s32.totalorder %s65, %s67
    %p71 = scmp.eq.s32.totalorder %s15, 0
    %p72 = por %p70, %p71
    %p73 = scmp.ne.s32.totalorder %s65, %s67
    %p74 = scmp.eq.s32.totalorder %s20, 1
    %p75 = por %p73, %p74
    %p76 = scmp.ne.s32.totalorder %s67, %s68
    %p77 = scmp.eq.s32.totalorder %s20, 0
    %p78 = por %p76, %p77
    %p79 = scmp.ne.s32.totalorder %s67, %s68
    %p80 = scmp.eq.s32.totalorder %s21, 1
    %p81 = por %p79, %p80
    %p83 = scmp.ne.s32.totalorder %s68, %s82
    %p84 = scmp.eq.s32.totalorder %s21, 0
    %p85 = por %p83, %p84
    %s87 = sadd.s32 %s86, 1
    %p90 = scmp.eq.s32.totalorder %s15, 1
    %p91 = scmp.ne.s32.totalorder %s86, %s88
    %p92 = scmp.eq.s32.totalorder %s15, 0
    %p93 = por %p91, %p92
    %p94 = scmp.ne.s32.totalorder %s86, %s88
    %p95 = scmp.eq.s32.totalorder %s20, 1
    %p96 = por %p94, %p95
    %p97 = scmp.ne.s32.totalorder %s88, %s89
    %p98 = scmp.eq.s32.totalorder %s20, 0
    %p99 = por %p97, %p98
    %p100 = scmp.ne.s32.totalorder %s88, %s89
    %p101 = scmp.eq.s32.totalorder %s21, 1
    %p102 = por %p100, %p101
    %p104 = scmp.ne.s32.totalorder %s89, %s103
    %p105 = scmp.eq.s32.totalorder %s21, 0
    %p106 = por %p104, %p105
    %s108 = sadd.s32 %s107, 1
    %p111 = scmp.eq.s32.totalorder %s15, 1
    %p112 = scmp.ne.s32.totalorder %s107, %s109
    %p113 = scmp.eq.s32.totalorder %s15, 0
    %p114 = por %p112, %p113
    %p115 = scmp.ne.s32.totalorder %s107, %s109
    %p116 = scmp.eq.s32.totalorder %s20, 1
    %p117 = por %p115, %p116
    %p118 = scmp.ne.s32.totalorder %s109, %s110
    %p119 = scmp.eq.s32.totalorder %s20, 0
    %p120 = por %p118, %p119
    %p121 = scmp.ne.s32.totalorder %s109, %s110
    %p122 = scmp.eq.s32.totalorder %s21, 1
    %p123 = por %p121, %p122
    %p125 = scmp.ne.s32.totalorder %s110, %s124
    %p126 = scmp.eq.s32.totalorder %s21, 0
    %p127 = por %p125, %p126
    %s129 = sadd.s32 %s128, 1
    %p132 = scmp.eq.s32.totalorder %s15, 1
    %p133 = scmp.ne.s32.totalorder %s128, %s130
    %p134 = scmp.eq.s32.totalorder %s15, 0
    %p135 = por %p133, %p134
    %p136 = scmp.ne.s32.totalorder %s128, %s130
    %p137 = scmp.eq.s32.totalorder %s20, 1
    %p138 = por %p136, %p137
    %p139 = scmp.ne.s32.totalorder %s130, %s131
    %p140 = scmp.eq.s32.totalorder %s20, 0
    %p141 = por %p139, %p140
    %p142 = scmp.ne.s32.totalorder %s130, %s131
    %p143 = scmp.eq.s32.totalorder %s21, 1
    %p144 = por %p142, %p143
    %p146 = scmp.ne.s32.totalorder %s131, %s145
    %p147 = scmp.eq.s32.totalorder %s21, 0
    %p148 = por %p146, %p147
    %s150 = sadd.s32 %s149, 1
    %p153 = scmp.eq.s32.totalorder %s15, 1
    %p154 = scmp.ne.s32.totalorder %s149, %s151
    %p155 = scmp.eq.s32.totalorder %s15, 0
    %p156 = por %p154, %p155
    %p157 = scmp.ne.s32.totalorder %s149, %s151
    %p158 = scmp.eq.s32.totalorder %s20, 1
    %p159 = por %p157, %p158
    %p160 = scmp.ne.s32.totalorder %s151, %s152
    %p161 = scmp.eq.s32.totalorder %s20, 0
    %p162 = por %p160, %p161
    %p163 = scmp.ne.s32.totalorder %s151, %s152
    %p164 = scmp.eq.s32.totalorder %s21, 1
    %p165 = por %p163, %p164
    %p167 = scmp.ne.s32.totalorder %s152, %s166
    %p168 = scmp.eq.s32.totalorder %s21, 0
    %p169 = por %p167, %p168
    %s171 = sadd.s32 %s170, 1
    %p174 = scmp.eq.s32.totalorder %s15, 1
    %p175 = scmp.ne.s32.totalorder %s170, %s172
    %p176 = scmp.eq.s32.totalorder %s15, 0
    %p177 = por %p175, %p176
    %p178 = scmp.ne.s32.totalorder %s170, %s172
    %p179 = scmp.eq.s32.totalorder %s20, 1
    %p180 = por %p178, %p179
    %p181 = scmp.ne.s32.totalorder %s172, %s173
    %p182 = scmp.eq.s32.totalorder %s20, 0
    %p183 = por %p181, %p182
    %p184 = scmp.ne.s32.totalorder %s172, %s173
    %p185 = scmp.eq.s32.totalorder %s21, 1
    %p186 = por %p184, %p185
    %p188 = scmp.ne.s32.totalorder %s173, %s187
    %p189 = scmp.eq.s32.totalorder %s21, 0
    %p190 = por %p188, %p189
    %s192 = sadd.s32 %s191, 1
    %p195 = scmp.eq.s32.totalorder %s15, 1
    %p196 = scmp.ne.s32.totalorder %s191, %s193
    %p197 = scmp.eq.s32.totalorder %s15, 0
    %p198 = por %p196, %p197
    %p199 = scmp.ne.s32.totalorder %s191, %s193
    %p200 = scmp.eq.s32.totalorder %s20, 1
    %p201 = por %p199, %p200
    %p202 = scmp.ne.s32.totalorder %s193, %s194
    %p203 = scmp.eq.s32.totalorder %s20, 0
    %p204 = por %p202, %p203
    %p205 = scmp.ne.s32.totalorder %s193, %s194
    %p206 = scmp.eq.s32.totalorder %s21, 1
    %p207 = por %p205, %p206
    %p209 = scmp.ne.s32.totalorder %s194, %s208
    %p210 = scmp.eq.s32.totalorder %s21, 0
    %p211 = por %p209, %p210
    %s213 = sadd.s32 %s212, 1
    %p216 = scmp.eq.s32.totalorder %s15, 1
    %p217 = scmp.ne.s32.totalorder %s212, %s214
    %p218 = scmp.eq.s32.totalorder %s15, 0
    %p219 = por %p217, %p218
    %p220 = scmp.ne.s32.totalorder %s212, %s214
    %p221 = scmp.eq.s32.totalorder %s20, 1
    %p222 = por %p220, %p221
    %p223 = scmp.ne.s32.totalorder %s214, %s215
    %p224 = scmp.eq.s32.totalorder %s20, 0
    %p225 = por %p223, %p224
    %p226 = scmp.ne.s32.totalorder %s214, %s215
    %p227 = scmp.eq.s32.totalorder %s21, 1
    %p228 = por %p226, %p227
    %p230 = scmp.ne.s32.totalorder %s215, %s229
    %p231 = scmp.eq.s32.totalorder %s21, 0
    %p232 = por %p230, %p231
    %s233 = ssub.s32 %s22, %s34
    %p234 = scmp.eq.s32.totalorder %s233, 0
    %s236 = sadd.s32 %s235, 1
    %s237 = scalar_select %p234, %s235, %s236
    %p240 = pneg %p234
    %p241 = scmp.eq.s32.totalorder %s15, 1
    %p242 = por %p240, %p241
    %p243 = scmp.ne.s32.totalorder %s235, %s238
    %p244 = scmp.eq.s32.totalorder %s15, 0
    %p245 = por %p243, %p244
    %p246 = scmp.ne.s32.totalorder %s235, %s238
    %p247 = scmp.eq.s32.totalorder %s20, 1
    %p248 = por %p246, %p247
    %p249 = scmp.ne.s32.totalorder %s238, %s239
    %p250 = scmp.eq.s32.totalorder %s20, 0
    %p251 = por %p249, %p250
    %p252 = scmp.ne.s32.totalorder %s238, %s239
    %p253 = scmp.eq.s32.totalorder %s21, 1
    %p254 = por %p252, %p253
    %p256 = scmp.ne.s32.totalorder %s239, %s255
    %p257 = scmp.eq.s32.totalorder %s21, 0
    %p258 = por %p256, %p257
    %p259 = scmp.le.s32.totalorder 1, %s15
    %p260 = scmp.lt.s32.totalorder %s15, 3
    %p261 = pnand %p259, %p260
    %p262 = pneg %p261
    // Predicated region
    $region9: #{capsule_bilstm_forward.1} parent=5 // pred_check
      _
    $region10: #{capsule_bilstm_forward.1} parent=5 // pred_check_branch
      %264 = sbr.rel (%p261) target = $region12
    $region11: #{capsule_bilstm_forward.1} parent=5 // pred_region
      %s265 = ssub.s32 %s15, 1
      // Predicated region
      $region13: #{capsule_bilstm_forward.1} parent=11 // pred_check
        %p266 = pneg %p78
      $region14: #{capsule_bilstm_forward.1} parent=11 // pred_check_branch
        %268 = sbr.rel (%p266) target = $region16
      $region15: #{capsule_bilstm_forward.1} parent=11 // pred_region
        _
      $region16: #{capsule_bilstm_forward.1} parent=11 // pred_fallthru
        _
      // Predicated region
      $region17: #{capsule_bilstm_forward.1} parent=11 // pred_check
        %p269 = pneg %p99
      $region18: #{capsule_bilstm_forward.1} parent=11 // pred_check_branch
        %271 = sbr.rel (%p269) target = $region20
      $region19: #{capsule_bilstm_forward.1} parent=11 // pred_region
        _
      $region20: #{capsule_bilstm_forward.1} parent=11 // pred_fallthru
        _
      // Predicated region
      $region21: #{capsule_bilstm_forward.1} parent=11 // pred_check
        %p272 = pneg %p120
      $region22: #{capsule_bilstm_forward.1} parent=11 // pred_check_branch
        %274 = sbr.rel (%p272) target = $region24
      $region23: #{capsule_bilstm_forward.1} parent=11 // pred_region
        _
      $region24: #{capsule_bilstm_forward.1} parent=11 // pred_fallthru
        _
      // Predicated region
      $region25: #{capsule_bilstm_forward.1} parent=11 // pred_check
        %p275 = pneg %p141
      $region26: #{capsule_bilstm_forward.1} parent=11 // pred_check_branch
        %277 = sbr.rel (%p275) target = $region28
      $region27: #{capsule_bilstm_forward.1} parent=11 // pred_region
        _
      $region28: #{capsule_bilstm_forward.1} parent=11 // pred_fallthru
        _
      // Predicated region
      $region29: #{capsule_bilstm_forward.1} parent=11 // pred_check
        %p278 = pneg %p162
      $region30: #{capsule_bilstm_forward.1} parent=11 // pred_check_branch
        %280 = sbr.rel (%p278) target = $region32
      $region31: #{capsule_bilstm_forward.1} parent=11 // pred_region
        _
      $region32: #{capsule_bilstm_forward.1} parent=11 // pred_fallthru
        _
      // Predicated region
      $region33: #{capsule_bilstm_forward.1} parent=11 // pred_check
        %p281 = pneg %p183
      $region34: #{capsule_bilstm_forward.1} parent=11 // pred_check_branch
        %283 = sbr.rel (%p281) target = $region36
      $region35: #{capsule_bilstm_forward.1} parent=11 // pred_region
        _
      $region36: #{capsule_bilstm_forward.1} parent=11 // pred_fallthru
        _
      // Predicated region
      $region37: #{capsule_bilstm_forward.1} parent=11 // pred_check
        %p284 = pneg %p204
      $region38: #{capsule_bilstm_forward.1} parent=11 // pred_check_branch
        %286 = sbr.rel (%p284) target = $region40
      $region39: #{capsule_bilstm_forward.1} parent=11 // pred_region
        _
      $region40: #{capsule_bilstm_forward.1} parent=11 // pred_fallthru
        _
      // Predicated region
      $region41: #{capsule_bilstm_forward.1} parent=11 // pred_check
        %p287 = pneg %p225
      $region42: #{capsule_bilstm_forward.1} parent=11 // pred_check_branch
        %289 = sbr.rel (%p287) target = $region44
      $region43: #{capsule_bilstm_forward.1} parent=11 // pred_region
        _
      $region44: #{capsule_bilstm_forward.1} parent=11 // pred_fallthru
        _
    $region12: #{capsule_bilstm_forward.1} parent=5 // pred_fallthru
      _
    %p290 = scmp.lt.s32.totalorder %s15, 2
    // Predicated region
    $region45: #{capsule_bilstm_forward.1} parent=5 // pred_check
      %p291 = pneg %p290
    $region46: #{capsule_bilstm_forward.1} parent=5 // pred_check_branch
      %293 = sbr.rel (%p291) target = $region48
    $region47: #{capsule_bilstm_forward.1} parent=5 // pred_region
      // Predicated region
      $region49: #{capsule_bilstm_forward.1} parent=47 // pred_check
        %p294 = pneg %p51
      $region50: #{capsule_bilstm_forward.1} parent=47 // pred_check_branch
        %296 = sbr.rel (%p294) target = $region52
      $region51: #{capsule_bilstm_forward.1} parent=47 // pred_region
        %s297 = smul.u32 %s22, 2
        %s298 = sadd.s32 %s297, %s23
        %s299 = smul.u32 4, %s298
        %p300 = scmp.lt.s32.totalorder %s299, 7
        %s301 = scalar_select %p300, %s299, 7
        %s302 = smul.addr %s301, 4
        %s303 = scalar_lea.vmem %s0, %s302
        %s304 = smul.u32 %s22, 2
        %s305 = sadd.s32 %s304, %s23
        %s306 = smul.u32 4, %s305
      $region52: #{capsule_bilstm_forward.1} parent=47 // pred_fallthru
        _
    $region48: #{capsule_bilstm_forward.1} parent=5 // pred_fallthru
      _
    %p307 = scmp.le.s32.totalorder 1, %s15
    %p308 = scmp.lt.s32.totalorder %s15, 3
    %p309 = pnand %p307, %p308
    %p310 = pneg %p309
    // Predicated region
    $region53: #{capsule_bilstm_forward.1} parent=5 // pred_check
      _
    $region54: #{capsule_bilstm_forward.1} parent=5 // pred_check_branch
      %312 = sbr.rel (%p309) target = $region56
    $region55: #{capsule_bilstm_forward.1} parent=5 // pred_region
      %s313 = ssub.s32 %s15, 1
      %s314 = smul.u32 %s24, 2
      %s315 = sadd.s32 %s314, %s25
      %s316 = smul.u32 4, %s315
      %p317 = scmp.lt.s32.totalorder %s316, 7
      %s318 = scalar_select %p317, %s316, 7
      %s319 = smul.addr %s318, 4
      %s320 = scalar_lea.vmem %s0, %s319
      %p321 = pneg %p57
      %p322 = pneg %p54
      %p323 = pneg %p78
      %p324 = pneg %p75
      %p325 = pneg %p99
      %p326 = pneg %p96
      %p327 = pneg %p120
      %p328 = pneg %p117
      %p329 = pneg %p141
      %p330 = pneg %p138
      %p331 = pneg %p162
      %p332 = pneg %p159
      %p333 = pneg %p183
      %p334 = pneg %p180
      %p335 = pneg %p204
      %p336 = pneg %p201
      %p337 = pneg %p225
      %p338 = pneg %p222
      %p339 = pneg %p251
      %p340 = pneg %p248
      %p341 = scmp.lt.s32.totalorder %s24, 0
      %s342 = scalar_select %p341, %s24, 0
      %s343 = smul.addr %s342, 8
      %s344 = scalar_lea.vmem %s9, %s343
      %s345 = smul.u32 %s24, 2
      %s346 = sadd.s32 %s345, %s25
      %s347 = smul.u32 4, %s346
      %p348 = scmp.lt.s32.totalorder %s347, 7
      %s349 = scalar_select %p348, %s347, 7
      %s350 = smul.addr %s349, 4
      %s351 = scalar_lea.vmem %s0, %s350
      %s352 = smul.u32 %s24, 2
      %s353 = sadd.s32 %s352, %s25
      %s354 = smul.u32 4, %s353
      %p355 = scmp.lt.s32.totalorder %s24, 0
      %s356 = scalar_select %p355, %s24, 0
      %s357 = smul.addr %s356, 8
      %s358 = scalar_lea.vmem %s9, %s357
      %p360 = scmp.eq.s32.totalorder %s25, 0
      // Predicated region
      $region57: #{capsule_bilstm_forward.1} parent=55 // pred_check
        %p361 = pneg %p360
      $region58: #{capsule_bilstm_forward.1} parent=55 // pred_check_branch
        %363 = sbr.rel (%p361) target = $region60
      $region59: #{capsule_bilstm_forward.1} parent=55 // pred_region
        %364 = vst [vmem:[#allocation2] sm:$0xff] 0.0
        %365 = vst [vmem:[#allocation3] sm:$0xff] 0.0
      $region60: #{capsule_bilstm_forward.1} parent=55 // pred_fallthru
        _
      %v366 = vld [vmem:[%s351] sm:$0xf]
      %v367 = vld [vmem:[%s351 + $0x4] sm:$0xf]
      %v368 = vld [vmem:[%s351 + $0x8] sm:$0xf]
      %v369 = vld [vmem:[%s351 + $0xc] sm:$0xf]
      %v370 = vld [vmem:[%s1] sm:$0xff]
      %v371 = vld [vmem:[%s1 + $0x8] sm:$0xff]
      %v372 = vld [vmem:[%s1 + $0x10] sm:$0xff]
      %v373 = vld [vmem:[%s1 + $0x18] sm:$0xff]
      %v374 = vld [vmem:[%s3] sm:$0xf]
      %v376 = vlaneseq
      %v377 = vshrl.u32 %v376, 7
      %v378 = vsub.s32 0, %v377
      %v379 = vrot.slane %v374, %v378
      %v380 = vlaneseq
      %v381 = vshrl.u32 %v380, 7
      %v382 = vsub.s32 1, %v381
      %v383 = vrot.slane %v374, %v382
      %v384 = vlaneseq
      %v385 = vshrl.u32 %v384, 7
      %v386 = vsub.s32 2, %v385
      %v387 = vrot.slane %v374, %v386
      %v388 = vlaneseq
      %v389 = vshrl.u32 %v388, 7
      %v390 = vsub.s32 3, %v389
      %v391 = vrot.slane %v374, %v390
      %v400 = vunpack.c.l.b16 %v366
      %v401 = vunpack.c.l.b16 %v367
      %v402 = vunpack.c.l.b16 %v368
      %v403 = vunpack.c.l.b16 %v369
      %v404 = vpack.c.b16 %v401, %v400
      %v405 = vpack.c.b16 %v403, %v402
      %v410 = vunpack.c.l.b16 %v370
      %v411 = vunpack.c.h.b16 %v370
      %v412 = vunpack.c.l.b16 %v371
      %v413 = vunpack.c.h.b16 %v371
      %v414 = vunpack.c.l.b16 %v372
      %v415 = vunpack.c.h.b16 %v372
      %v416 = vunpack.c.l.b16 %v373
      %v417 = vunpack.c.h.b16 %v373
      %v418 = vpack.c.b16 %v414, %v410
      %v419 = vpack.c.b16 %v415, %v411
      %v420 = vpack.c.b16 %v416, %v412
      %v421 = vpack.c.b16 %v417, %v413
      %vm426 = vcmask 130048
      %v428 = vsel %vm426, %v404, 0
      %v431 = vsel %vm426, %v405, 0
      %433 = vmatprep.subr.bf16.mxu0 %v419
      %434 = vmatpush1.bf16.msra.mxu0 %v418
      %435 = vmatprep.subr.bf16.mxu0 0
      %436 = vmatpush1.bf16.msra.mxu0 0
      %437 = vmatprep.subr.bf16.mxu0 0
      %438 = vmatpush1.bf16.msra.mxu0 0
      %439 = vmatprep.subr.bf16.mxu0 0
      %440 = vmatpush1.bf16.msra.mxu0 0
      %441 = vmatprep.subr.bf16.mxu0 0
      %442 = vmatpush1.bf16.msra.mxu0 0
      %443 = vmatprep.subr.bf16.mxu0 0
      %444 = vmatpush1.bf16.msra.mxu0 0
      %445 = vmatprep.subr.bf16.mxu0 0
      %446 = vmatpush1.bf16.msra.mxu0 0
      %447 = vmatprep.subr.bf16.mxu0 0
      %448 = vmatpush1.bf16.msra.mxu0 0
      %449 = vmatprep.subr.bf16.mxu0 0
      %450 = vmatpush1.bf16.msra.mxu0 0
      %451 = vmatprep.subr.bf16.mxu0 0
      %452 = vmatpush1.bf16.msra.mxu0 0
      %453 = vmatprep.subr.bf16.mxu0 0
      %454 = vmatpush1.bf16.msra.mxu0 0
      %455 = vmatprep.subr.bf16.mxu0 0
      %456 = vmatpush1.bf16.msra.mxu0 0
      %457 = vmatprep.subr.bf16.mxu0 0
      %458 = vmatpush1.bf16.msra.mxu0 0
      %459 = vmatprep.subr.bf16.mxu0 0
      %460 = vmatpush1.bf16.msra.mxu0 0
      %461 = vmatprep.subr.bf16.mxu0 0
      %462 = vmatpush1.bf16.msra.mxu0 0
      %463 = vmatprep.subr.bf16.mxu0 0
      %464 = vmatpush1.bf16.msra.mxu0 0
      %465 = vmatprep.mubr.bf16.mxu0 0
      %466 = vmatmul.mubr.bf16.gmra.mrb[0].mxu0 %v428
      %v467 = vpop.f32.mrb[0].mxu0
      %v468 = vadd.f32 %v379, %v467
      %v469 = vpop.f32.mrb[0].mxu0
      %v470 = vadd.f32 %v383, %v469
      %v471 = vpop.f32.mrb[0].mxu0
      %v472 = vadd.f32 %v379, %v471
      %v473 = vpop.f32.mrb[0].mxu0
      %v474 = vadd.f32 %v383, %v473
      %475 = vmatprep.mubr.bf16.mxu0 0
      %476 = vmatmul.mubr.bf16.gmra.mrb[0].mxu0 %v431
      %v477 = vpop.f32.mrb[0].mxu0
      %v478 = vadd.f32 %v379, %v477
      %v479 = vpop.f32.mrb[0].mxu0
      %v480 = vadd.f32 %v383, %v479
      %v481 = vpop.f32.mrb[0].mxu0
      %v482 = vadd.f32 %v379, %v481
      %v483 = vpop.f32.mrb[0].mxu0
      %v484 = vadd.f32 %v383, %v483
      %485 = vdwg.mxu0
      %486 = vmatprep.subr.bf16.mxu0 %v421
      %487 = vmatpush1.bf16.msra.mxu0 %v420
      %488 = vmatprep.subr.bf16.mxu0 0
      %489 = vmatpush1.bf16.msra.mxu0 0
      %490 = vmatprep.subr.bf16.mxu0 0
      %491 = vmatpush1.bf16.msra.mxu0 0
      %492 = vmatprep.subr.bf16.mxu0 0
      %493 = vmatpush1.bf16.msra.mxu0 0
      %494 = vmatprep.subr.bf16.mxu0 0
      %495 = vmatpush1.bf16.msra.mxu0 0
      %496 = vmatprep.subr.bf16.mxu0 0
      %497 = vmatpush1.bf16.msra.mxu0 0
      %498 = vmatprep.subr.bf16.mxu0 0
      %499 = vmatpush1.bf16.msra.mxu0 0
      %500 = vmatprep.subr.bf16.mxu0 0
      %501 = vmatpush1.bf16.msra.mxu0 0
      %502 = vmatprep.subr.bf16.mxu0 0
      %503 = vmatpush1.bf16.msra.mxu0 0
      %504 = vmatprep.subr.bf16.mxu0 0
      %505 = vmatpush1.bf16.msra.mxu0 0
      %506 = vmatprep.subr.bf16.mxu0 0
      %507 = vmatpush1.bf16.msra.mxu0 0
      %508 = vmatprep.subr.bf16.mxu0 0
      %509 = vmatpush1.bf16.msra.mxu0 0
      %510 = vmatprep.subr.bf16.mxu0 0
      %511 = vmatpush1.bf16.msra.mxu0 0
      %512 = vmatprep.subr.bf16.mxu0 0
      %513 = vmatpush1.bf16.msra.mxu0 0
      %514 = vmatprep.subr.bf16.mxu0 0
      %515 = vmatpush1.bf16.msra.mxu0 0
      %516 = vmatprep.subr.bf16.mxu0 0
      %517 = vmatpush1.bf16.msra.mxu0 0
      %518 = vmatprep.mubr.bf16.mxu0 0
      %519 = vmatmul.mubr.bf16.gmra.mrb[0].mxu0 %v428
      %v520 = vpop.f32.mrb[0].mxu0
      %v521 = vadd.f32 %v387, %v520
      %v522 = vpop.f32.mrb[0].mxu0
      %v523 = vadd.f32 %v391, %v522
      %v524 = vpop.f32.mrb[0].mxu0
      %v525 = vadd.f32 %v387, %v524
      %v526 = vpop.f32.mrb[0].mxu0
      %v527 = vadd.f32 %v391, %v526
      %528 = vmatprep.mubr.bf16.mxu0 0
      %529 = vmatmul.mubr.bf16.gmra.mrb[0].mxu0 %v431
      %v530 = vpop.f32.mrb[0].mxu0
      %v531 = vadd.f32 %v387, %v530
      %v532 = vpop.f32.mrb[0].mxu0
      %v533 = vadd.f32 %v391, %v532
      %v534 = vpop.f32.mrb[0].mxu0
      %v535 = vadd.f32 %v387, %v534
      %v536 = vpop.f32.mrb[0].mxu0
      %v537 = vadd.f32 %v391, %v536
      %538 = vdwg.mxu0
      %539 = vst [vmem:[#allocation4] sm:$0xff] %v468
      %540 = vst [vmem:[#allocation4 + $0x8] sm:$0xff] %v470
      %541 = vst [vmem:[#allocation4 + $0x10] sm:$0xff] %v521
      %542 = vst [vmem:[#allocation4 + $0x18] sm:$0xff] %v523
      %543 = vst [vmem:[#allocation4 + $0x20] sm:$0xff] %v472
      %544 = vst [vmem:[#allocation4 + $0x28] sm:$0xff] %v474
      %545 = vst [vmem:[#allocation4 + $0x30] sm:$0xff] %v525
      %546 = vst [vmem:[#allocation4 + $0x38] sm:$0xff] %v527
      %547 = vst [vmem:[#allocation4 + $0x40] sm:$0xff] %v478
      %548 = vst [vmem:[#allocation4 + $0x48] sm:$0xff] %v480
      %549 = vst [vmem:[#allocation4 + $0x50] sm:$0xff] %v531
      %550 = vst [vmem:[#allocation4 + $0x58] sm:$0xff] %v533
      %551 = vst [vmem:[#allocation4 + $0x60] sm:$0xff] %v482
      %552 = vst [vmem:[#allocation4 + $0x68] sm:$0xff] %v484
      %553 = vst [vmem:[#allocation4 + $0x70] sm:$0xff] %v535
      %554 = vst [vmem:[#allocation4 + $0x78] sm:$0xff] %v537
      %v555 = vld [vmem:[%s2] sm:$0xff]
      %v556 = vld [vmem:[%s2 + $0x8] sm:$0xff]
      %v557 = vld [vmem:[%s2 + $0x10] sm:$0xff]
      %v558 = vld [vmem:[%s2 + $0x18] sm:$0xff]
      %v559 = vld [vmem:[%s2 + $0x20] sm:$0xff]
      %v560 = vld [vmem:[%s2 + $0x28] sm:$0xff]
      %v561 = vld [vmem:[%s2 + $0x30] sm:$0xff]
      %v562 = vld [vmem:[%s2 + $0x38] sm:$0xff]
      %v563 = vld [vmem:[%s2 + $0x40] sm:$0xff]
      %v564 = vld [vmem:[%s2 + $0x48] sm:$0xff]
      %v565 = vld [vmem:[%s2 + $0x50] sm:$0xff]
      %v566 = vld [vmem:[%s2 + $0x58] sm:$0xff]
      %v567 = vld [vmem:[%s2 + $0x60] sm:$0xff]
      %v568 = vld [vmem:[%s2 + $0x68] sm:$0xff]
      %v569 = vld [vmem:[%s2 + $0x70] sm:$0xff]
      %v570 = vld [vmem:[%s2 + $0x78] sm:$0xff]
      %v571 = vld [vmem:[%s2 + $0x80] sm:$0xff]
      %v572 = vld [vmem:[%s2 + $0x88] sm:$0xff]
      %v573 = vld [vmem:[%s2 + $0x90] sm:$0xff]
      %v574 = vld [vmem:[%s2 + $0x98] sm:$0xff]
      %v575 = vld [vmem:[%s2 + $0xa0] sm:$0xff]
      %v576 = vld [vmem:[%s2 + $0xa8] sm:$0xff]
      %v577 = vld [vmem:[%s2 + $0xb0] sm:$0xff]
      %v578 = vld [vmem:[%s2 + $0xb8] sm:$0xff]
      %v579 = vld [vmem:[%s2 + $0xc0] sm:$0xff]
      %v580 = vld [vmem:[%s2 + $0xc8] sm:$0xff]
      %v581 = vld [vmem:[%s2 + $0xd0] sm:$0xff]
      %v582 = vld [vmem:[%s2 + $0xd8] sm:$0xff]
      %v583 = vld [vmem:[%s2 + $0xe0] sm:$0xff]
      %v584 = vld [vmem:[%s2 + $0xe8] sm:$0xff]
      %v585 = vld [vmem:[%s2 + $0xf0] sm:$0xff]
      %v586 = vld [vmem:[%s2 + $0xf8] sm:$0xff]
      %v587 = vld [vmem:[#allocation2] sm:$0xff]
      %v588 = vld [vmem:[#allocation3] sm:$0xff]
      %s589 = smul.u32 0, 4
      %s590 = smul.addr %s589, 8
      %s591 = scalar_lea.vmem [#allocation4], %s590
      %v592 = vld [vmem:[%s591] sm:$0xff]
      %v593 = vld [vmem:[%s591 + $0x8] sm:$0xff]
      %v594 = vld [vmem:[%s591 + $0x10] sm:$0xff]
      %v595 = vld [vmem:[%s591 + $0x18] sm:$0xff]
      %v596 = vpack.c.bf16 %v587, %v587
      %v629 = vunpack.c.l.b16 %v555
      %v630 = vunpack.c.h.b16 %v555
      %v631 = vunpack.c.l.b16 %v556
      %v632 = vunpack.c.h.b16 %v556
      %v633 = vunpack.c.l.b16 %v557
      %v634 = vunpack.c.h.b16 %v557
      %v635 = vunpack.c.l.b16 %v558
      %v636 = vunpack.c.h.b16 %v558
      %v637 = vunpack.c.l.b16 %v559
      %v638 = vunpack.c.h.b16 %v559
      %v639 = vunpack.c.l.b16 %v560
      %v640 = vunpack.c.h.b16 %v560
      %v641 = vunpack.c.l.b16 %v561
      %v642 = vunpack.c.h.b16 %v561
      %v643 = vunpack.c.l.b16 %v562
      %v644 = vunpack.c.h.b16 %v562
      %v645 = vunpack.c.l.b16 %v563
      %v646 = vunpack.c.h.b16 %v563
      %v647 = vunpack.c.l.b16 %v564
      %v648 = vunpack.c.h.b16 %v564
      %v649 = vunpack.c.l.b16 %v565
      %v650 = vunpack.c.h.b16 %v565
      %v651 = vunpack.c.l.b16 %v566
      %v652 = vunpack.c.h.b16 %v566
      %v653 = vunpack.c.l.b16 %v567
      %v654 = vunpack.c.h.b16 %v567
      %v655 = vunpack.c.l.b16 %v568
      %v656 = vunpack.c.h.b16 %v568
      %v657 = vunpack.c.l.b16 %v569
      %v658 = vunpack.c.h.b16 %v569
      %v659 = vunpack.c.l.b16 %v570
      %v660 = vunpack.c.h.b16 %v570
      %v661 = vunpack.c.l.b16 %v571
      %v662 = vunpack.c.h.b16 %v571
      %v663 = vunpack.c.l.b16 %v572
      %v664 = vunpack.c.h.b16 %v572
      %v665 = vunpack.c.l.b16 %v573
      %v666 = vunpack.c.h.b16 %v573
      %v667 = vunpack.c.l.b16 %v574
      %v668 = vunpack.c.h.b16 %v574
      %v669 = vunpack.c.l.b16 %v575
      %v670 = vunpack.c.h.b16 %v575
      %v671 = vunpack.c.l.b16 %v576
      %v672 = vunpack.c.h.b16 %v576
      %v673 = vunpack.c.l.b16 %v577
      %v674 = vunpack.c.h.b16 %v577
      %v675 = vunpack.c.l.b16 %v578
      %v676 = vunpack.c.h.b16 %v578
      %v677 = vunpack.c.l.b16 %v579
      %v678 = vunpack.c.h.b16 %v579
      %v679 = vunpack.c.l.b16 %v580
      %v680 = vunpack.c.h.b16 %v580
      %v681 = vunpack.c.l.b16 %v581
      %v682 = vunpack.c.h.b16 %v581
      %v683 = vunpack.c.l.b16 %v582
      %v684 = vunpack.c.h.b16 %v582
      %v685 = vunpack.c.l.b16 %v583
      %v686 = vunpack.c.h.b16 %v583
      %v687 = vunpack.c.l.b16 %v584
      %v688 = vunpack.c.h.b16 %v584
      %v689 = vunpack.c.l.b16 %v585
      %v690 = vunpack.c.h.b16 %v585
      %v691 = vunpack.c.l.b16 %v586
      %v692 = vunpack.c.h.b16 %v586
      %v693 = vpack.c.b16 %v633, %v629
      %v694 = vpack.c.b16 %v634, %v630
      %v695 = vpack.c.b16 %v635, %v631
      %v696 = vpack.c.b16 %v636, %v632
      %v697 = vpack.c.b16 %v641, %v637
      %v698 = vpack.c.b16 %v642, %v638
      %v699 = vpack.c.b16 %v643, %v639
      %v700 = vpack.c.b16 %v644, %v640
      %v701 = vpack.c.b16 %v649, %v645
      %v702 = vpack.c.b16 %v650, %v646
      %v703 = vpack.c.b16 %v651, %v647
      %v704 = vpack.c.b16 %v652, %v648
      %v705 = vpack.c.b16 %v657, %v653
      %v706 = vpack.c.b16 %v658, %v654
      %v707 = vpack.c.b16 %v659, %v655
      %v708 = vpack.c.b16 %v660, %v656
      %v709 = vpack.c.b16 %v665, %v661
      %v710 = vpack.c.b16 %v666, %v662
      %v711 = vpack.c.b16 %v667, %v663
      %v712 = vpack.c.b16 %v668, %v664
      %v713 = vpack.c.b16 %v673, %v669
      %v714 = vpack.c.b16 %v674, %v670
      %v715 = vpack.c.b16 %v675, %v671
      %v716 = vpack.c.b16 %v676, %v672
      %v717 = vpack.c.b16 %v681, %v677
      %v718 = vpack.c.b16 %v682, %v678
      %v719 = vpack.c.b16 %v683, %v679
      %v720 = vpack.c.b16 %v684, %v680
      %v721 = vpack.c.b16 %v689, %v685
      %v722 = vpack.c.b16 %v690, %v686
      %v723 = vpack.c.b16 %v691, %v687
      %v724 = vpack.c.b16 %v692, %v688
      %757 = vmatprep.subr.bf16.mxu0 %v694
      %758 = vmatpush1.bf16.msra.mxu0 %v693
      %759 = vmatprep.subr.bf16.mxu0 %v698
      %760 = vmatpush1.bf16.msra.mxu0 %v697
      %761 = vmatprep.subr.bf16.mxu0 %v702
      %762 = vmatpush1.bf16.msra.mxu0 %v701
      %763 = vmatprep.subr.bf16.mxu0 %v706
      %764 = vmatpush1.bf16.msra.mxu0 %v705
      %765 = vmatprep.subr.bf16.mxu0 %v710
      %766 = vmatpush1.bf16.msra.mxu0 %v709
      %767 = vmatprep.subr.bf16.mxu0 %v714
      %768 = vmatpush1.bf16.msra.mxu0 %v713
      %769 = vmatprep.subr.bf16.mxu0 %v718
      %770 = vmatpush1.bf16.msra.mxu0 %v717
      %771 = vmatprep.subr.bf16.mxu0 %v722
      %772 = vmatpush1.bf16.msra.mxu0 %v721
      %773 = vmatprep.subr.bf16.mxu0 0
      %774 = vmatpush1.bf16.msra.mxu0 0
      %775 = vmatprep.subr.bf16.mxu0 0
      %776 = vmatpush1.bf16.msra.mxu0 0
      %777 = vmatprep.subr.bf16.mxu0 0
      %778 = vmatpush1.bf16.msra.mxu0 0
      %779 = vmatprep.subr.bf16.mxu0 0
      %780 = vmatpush1.bf16.msra.mxu0 0
      %781 = vmatprep.subr.bf16.mxu0 0
      %782 = vmatpush1.bf16.msra.mxu0 0
      %783 = vmatprep.subr.bf16.mxu0 0
      %784 = vmatpush1.bf16.msra.mxu0 0
      %785 = vmatprep.subr.bf16.mxu0 0
      %786 = vmatpush1.bf16.msra.mxu0 0
      %787 = vmatprep.subr.bf16.mxu0 0
      %788 = vmatpush1.bf16.msra.mxu0 0
      %789 = vmatprep.mubr.bf16.mxu0 0
      %790 = vmatmul.mubr.bf16.gmra.mrb[0].mxu0 %v596
      %v791 = vpop.f32.mrb[0].mxu0
      %v792 = vadd.f32 0.0, %v791
      %v793 = vpop.f32.mrb[0].mxu0
      %v794 = vadd.f32 0.0, %v793
      %v795 = vpop.f32.mrb[0].mxu0
      %v796 = vpop.f32.mrb[0].mxu0
      %797 = vdwg.mxu0
      %798 = vmatprep.subr.bf16.mxu0 %v696
      %799 = vmatpush1.bf16.msra.mxu0 %v695
      %800 = vmatprep.subr.bf16.mxu0 %v700
      %801 = vmatpush1.bf16.msra.mxu0 %v699
      %802 = vmatprep.subr.bf16.mxu0 %v704
      %803 = vmatpush1.bf16.msra.mxu0 %v703
      %804 = vmatprep.subr.bf16.mxu0 %v708
      %805 = vmatpush1.bf16.msra.mxu0 %v707
      %806 = vmatprep.subr.bf16.mxu0 %v712
      %807 = vmatpush1.bf16.msra.mxu0 %v711
      %808 = vmatprep.subr.bf16.mxu0 %v716
      %809 = vmatpush1.bf16.msra.mxu0 %v715
      %810 = vmatprep.subr.bf16.mxu0 %v720
      %811 = vmatpush1.bf16.msra.mxu0 %v719
      %812 = vmatprep.subr.bf16.mxu0 %v724
      %813 = vmatpush1.bf16.msra.mxu0 %v723
      %814 = vmatprep.subr.bf16.mxu0 0
      %815 = vmatpush1.bf16.msra.mxu0 0
      %816 = vmatprep.subr.bf16.mxu0 0
      %817 = vmatpush1.bf16.msra.mxu0 0
      %818 = vmatprep.subr.bf16.mxu0 0
      %819 = vmatpush1.bf16.msra.mxu0 0
      %820 = vmatprep.subr.bf16.mxu0 0
      %821 = vmatpush1.bf16.msra.mxu0 0
      %822 = vmatprep.subr.bf16.mxu0 0
      %823 = vmatpush1.bf16.msra.mxu0 0
      %824 = vmatprep.subr.bf16.mxu0 0
      %825 = vmatpush1.bf16.msra.mxu0 0
      %826 = vmatprep.subr.bf16.mxu0 0
      %827 = vmatpush1.bf16.msra.mxu0 0
      %828 = vmatprep.subr.bf16.mxu0 0
      %829 = vmatpush1.bf16.msra.mxu0 0
      %830 = vmatprep.mubr.bf16.mxu0 0
      %831 = vmatmul.mubr.bf16.gmra.mrb[0].mxu0 %v596
      %v832 = vpop.f32.mrb[0].mxu0
      %v833 = vadd.f32 0.0, %v832
      %v834 = vpop.f32.mrb[0].mxu0
      %v835 = vadd.f32 0.0, %v834
      %v836 = vpop.f32.mrb[0].mxu0
      %v837 = vpop.f32.mrb[0].mxu0
      %838 = vdwg.mxu0
      %v839 = vadd.f32 %v592, %v792
      %v840 = vadd.f32 %v593, %v794
      %v841 = vadd.f32 %v594, %v833
      %v842 = vadd.f32 %v595, %v835
      %v843 = vxor.u32 %v839, 2147483648
      %v844 = vmul.f32 %v843, 1.442695
      %v845 = vpow.pop %v844
      %v846 = vadd.f32 %v845, 1.0
      %v847 = vrcp.pop %v846
      %v848 = vmul.f32 1.0, %v847
      %v849 = vxor.u32 %v840, 2147483648
      %v850 = vmul.f32 %v849, 1.442695
      %v851 = vpow.pop %v850
      %v852 = vadd.f32 %v851, 1.0
      %v853 = vrcp.pop %v852
      %v854 = vmul.f32 1.0, %v853
      %v855 = vtanh.pop %v841
      %v856 = vxor.u32 %v842, 2147483648
      %v857 = vmul.f32 %v856, 1.442695
      %v858 = vpow.pop %v857
      %v859 = vadd.f32 %v858, 1.0
      %v860 = vrcp.pop %v859
      %v861 = vmul.f32 1.0, %v860
      %v862 = vmul.f32 %v854, %v588
      %v863 = vmul.f32 %v848, %v855
      %v864 = vadd.f32 %v862, %v863
      %v865 = vtanh.pop %v864
      %v866 = vmul.f32 %v861, %v865
      %s867 = smul.u32 1, 4
      %s868 = smul.addr %s867, 8
      %s869 = scalar_lea.vmem [#allocation4], %s868
      %v870 = vld [vmem:[%s869] sm:$0xff]
      %v871 = vld [vmem:[%s869 + $0x8] sm:$0xff]
      %v872 = vld [vmem:[%s869 + $0x10] sm:$0xff]
      %v873 = vld [vmem:[%s869 + $0x18] sm:$0xff]
      %v874 = vpack.c.bf16 %v866, %v866
      %875 = vmatprep.subr.bf16.mxu0 %v694
      %876 = vmatpush1.bf16.msra.mxu0 %v693
      %877 = vmatprep.subr.bf16.mxu0 %v698
      %878 = vmatpush1.bf16.msra.mxu0 %v697
      %879 = vmatprep.subr.bf16.mxu0 %v702
      %880 = vmatpush1.bf16.msra.mxu0 %v701
      %881 = vmatprep.subr.bf16.mxu0 %v706
      %882 = vmatpush1.bf16.msra.mxu0 %v705
      %883 = vmatprep.subr.bf16.mxu0 %v710
      %884 = vmatpush1.bf16.msra.mxu0 %v709
      %885 = vmatprep.subr.bf16.mxu0 %v714
      %886 = vmatpush1.bf16.msra.mxu0 %v713
      %887 = vmatprep.subr.bf16.mxu0 %v718
      %888 = vmatpush1.bf16.msra.mxu0 %v717
      %889 = vmatprep.subr.bf16.mxu0 %v722
      %890 = vmatpush1.bf16.msra.mxu0 %v721
      %891 = vmatprep.subr.bf16.mxu0 0
      %892 = vmatpush1.bf16.msra.mxu0 0
      %893 = vmatprep.subr.bf16.mxu0 0
      %894 = vmatpush1.bf16.msra.mxu0 0
      %895 = vmatprep.subr.bf16.mxu0 0
      %896 = vmatpush1.bf16.msra.mxu0 0
      %897 = vmatprep.subr.bf16.mxu0 0
      %898 = vmatpush1.bf16.msra.mxu0 0
      %899 = vmatprep.subr.bf16.mxu0 0
      %900 = vmatpush1.bf16.msra.mxu0 0
      %901 = vmatprep.subr.bf16.mxu0 0
      %902 = vmatpush1.bf16.msra.mxu0 0
      %903 = vmatprep.subr.bf16.mxu0 0
      %904 = vmatpush1.bf16.msra.mxu0 0
      %905 = vmatprep.subr.bf16.mxu0 0
      %906 = vmatpush1.bf16.msra.mxu0 0
      %907 = vmatprep.mubr.bf16.mxu0 0
      %908 = vmatmul.mubr.bf16.gmra.mrb[0].mxu0 %v874
      %v909 = vpop.f32.mrb[0].mxu0
      %v910 = vadd.f32 0.0, %v909
      %v911 = vpop.f32.mrb[0].mxu0
      %v912 = vadd.f32 0.0, %v911
      %v913 = vpop.f32.mrb[0].mxu0
      %v914 = vpop.f32.mrb[0].mxu0
      %915 = vdwg.mxu0
      %916 = vmatprep.subr.bf16.mxu0 %v696
      %917 = vmatpush1.bf16.msra.mxu0 %v695
      %918 = vmatprep.subr.bf16.mxu0 %v700
      %919 = vmatpush1.bf16.msra.mxu0 %v699
      %920 = vmatprep.subr.bf16.mxu0 %v704
      %921 = vmatpush1.bf16.msra.mxu0 %v703
      %922 = vmatprep.subr.bf16.mxu0 %v708
      %923 = vmatpush1.bf16.msra.mxu0 %v707
      %924 = vmatprep.subr.bf16.mxu0 %v712
      %925 = vmatpush1.bf16.msra.mxu0 %v711
      %926 = vmatprep.subr.bf16.mxu0 %v716
      %927 = vmatpush1.bf16.msra.mxu0 %v715
      %928 = vmatprep.subr.bf16.mxu0 %v720
      %929 = vmatpush1.bf16.msra.mxu0 %v719
      %930 = vmatprep.subr.bf16.mxu0 %v724
      %931 = vmatpush1.bf16.msra.mxu0 %v723
      %932 = vmatprep.subr.bf16.mxu0 0
      %933 = vmatpush1.bf16.msra.mxu0 0
      %934 = vmatprep.subr.bf16.mxu0 0
      %935 = vmatpush1.bf16.msra.mxu0 0
      %936 = vmatprep.subr.bf16.mxu0 0
      %937 = vmatpush1.bf16.msra.mxu0 0
      %938 = vmatprep.subr.bf16.mxu0 0
      %939 = vmatpush1.bf16.msra.mxu0 0
      %940 = vmatprep.subr.bf16.mxu0 0
      %941 = vmatpush1.bf16.msra.mxu0 0
      %942 = vmatprep.subr.bf16.mxu0 0
      %943 = vmatpush1.bf16.msra.mxu0 0
      %944 = vmatprep.subr.bf16.mxu0 0
      %945 = vmatpush1.bf16.msra.mxu0 0
      %946 = vmatprep.subr.bf16.mxu0 0
      %947 = vmatpush1.bf16.msra.mxu0 0
      %948 = vmatprep.mubr.bf16.mxu0 0
      %949 = vmatmul.mubr.bf16.gmra.mrb[0].mxu0 %v874
      %v950 = vpop.f32.mrb[0].mxu0
      %v951 = vadd.f32 0.0, %v950
      %v952 = vpop.f32.mrb[0].mxu0
      %v953 = vadd.f32 0.0, %v952
      %v954 = vpop.f32.mrb[0].mxu0
      %v955 = vpop.f32.mrb[0].mxu0
      %956 = vdwg.mxu0
      %v957 = vadd.f32 %v870, %v910
      %v958 = vadd.f32 %v871, %v912
      %v959 = vadd.f32 %v872, %v951
      %v960 = vadd.f32 %v873, %v953
      %v961 = vxor.u32 %v957, 2147483648
      %v962 = vmul.f32 %v961, 1.442695
      %v963 = vpow.pop %v962
      %v964 = vadd.f32 %v963, 1.0
      %v965 = vrcp.pop %v964
      %v966 = vmul.f32 1.0, %v965
      %v967 = vxor.u32 %v958, 2147483648
      %v968 = vmul.f32 %v967, 1.442695
      %v969 = vpow.pop %v968
      %v970 = vadd.f32 %v969, 1.0
      %v971 = vrcp.pop %v970
      %v972 = vmul.f32 1.0, %v971
      %v973 = vtanh.pop %v959
      %v974 = vxor.u32 %v960, 2147483648
      %v975 = vmul.f32 %v974, 1.442695
      %v976 = vpow.pop %v975
      %v977 = vadd.f32 %v976, 1.0
      %v978 = vrcp.pop %v977
      %v979 = vmul.f32 1.0, %v978
      %v980 = vmul.f32 %v972, %v864
      %v981 = vmul.f32 %v966, %v973
      %v982 = vadd.f32 %v980, %v981
      %v983 = vtanh.pop %v982
      %v984 = vmul.f32 %v979, %v983
      %s985 = smul.u32 2, 4
      %s986 = smul.addr %s985, 8
      %s987 = scalar_lea.vmem [#allocation4], %s986
      %v988 = vld [vmem:[%s987] sm:$0xff]
      %v989 = vld [vmem:[%s987 + $0x8] sm:$0xff]
      %v990 = vld [vmem:[%s987 + $0x10] sm:$0xff]
      %v991 = vld [vmem:[%s987 + $0x18] sm:$0xff]
      %v992 = vpack.c.bf16 %v984, %v984
      %993 = vmatprep.subr.bf16.mxu0 %v694
      %994 = vmatpush1.bf16.msra.mxu0 %v693
      %995 = vmatprep.subr.bf16.mxu0 %v698
      %996 = vmatpush1.bf16.msra.mxu0 %v697
      %997 = vmatprep.subr.bf16.mxu0 %v702
      %998 = vmatpush1.bf16.msra.mxu0 %v701
      %999 = vmatprep.subr.bf16.mxu0 %v706
      %1000 = vmatpush1.bf16.msra.mxu0 %v705
      %1001 = vmatprep.subr.bf16.mxu0 %v710
      %1002 = vmatpush1.bf16.msra.mxu0 %v709
      %1003 = vmatprep.subr.bf16.mxu0 %v714
      %1004 = vmatpush1.bf16.msra.mxu0 %v713
      %1005 = vmatprep.subr.bf16.mxu0 %v718
      %1006 = vmatpush1.bf16.msra.mxu0 %v717
      %1007 = vmatprep.subr.bf16.mxu0 %v722
      %1008 = vmatpush1.bf16.msra.mxu0 %v721
      %1009 = vmatprep.subr.bf16.mxu0 0
      %1010 = vmatpush1.bf16.msra.mxu0 0
      %1011 = vmatprep.subr.bf16.mxu0 0
      %1012 = vmatpush1.bf16.msra.mxu0 0
      %1013 = vmatprep.subr.bf16.mxu0 0
      %1014 = vmatpush1.bf16.msra.mxu0 0
      %1015 = vmatprep.subr.bf16.mxu0 0
      %1016 = vmatpush1.bf16.msra.mxu0 0
      %1017 = vmatprep.subr.bf16.mxu0 0
      %1018 = vmatpush1.bf16.msra.mxu0 0
      %1019 = vmatprep.subr.bf16.mxu0 0
      %1020 = vmatpush1.bf16.msra.mxu0 0
      %1021 = vmatprep.subr.bf16.mxu0 0
      %1022 = vmatpush1.bf16.msra.mxu0 0
      %1023 = vmatprep.subr.bf16.mxu0 0
      %1024 = vmatpush1.bf16.msra.mxu0 0
      %1025 = vmatprep.mubr.bf16.mxu0 0
      %1026 = vmatmul.mubr.bf16.gmra.mrb[0].mxu0 %v992
      %v1027 = vpop.f32.mrb[0].mxu0
      %v1028 = vadd.f32 0.0, %v1027
      %v1029 = vpop.f32.mrb[0].mxu0
      %v1030 = vadd.f32 0.0, %v1029
      %v1031 = vpop.f32.mrb[0].mxu0
      %v1032 = vpop.f32.mrb[0].mxu0
      %1033 = vdwg.mxu0
      %1034 = vmatprep.subr.bf16.mxu0 %v696
      %1035 = vmatpush1.bf16.msra.mxu0 %v695
      %1036 = vmatprep.subr.bf16.mxu0 %v700
      %1037 = vmatpush1.bf16.msra.mxu0 %v699
      %1038 = vmatprep.subr.bf16.mxu0 %v704
      %1039 = vmatpush1.bf16.msra.mxu0 %v703
      %1040 = vmatprep.subr.bf16.mxu0 %v708
      %1041 = vmatpush1.bf16.msra.mxu0 %v707
      %1042 = vmatprep.subr.bf16.mxu0 %v712
      %1043 = vmatpush1.bf16.msra.mxu0 %v711
      %1044 = vmatprep.subr.bf16.mxu0 %v716
      %1045 = vmatpush1.bf16.msra.mxu0 %v715
      %1046 = vmatprep.subr.bf16.mxu0 %v720
      %1047 = vmatpush1.bf16.msra.mxu0 %v719
      %1048 = vmatprep.subr.bf16.mxu0 %v724
      %1049 = vmatpush1.bf16.msra.mxu0 %v723
      %1050 = vmatprep.subr.bf16.mxu0 0
      %1051 = vmatpush1.bf16.msra.mxu0 0
      %1052 = vmatprep.subr.bf16.mxu0 0
      %1053 = vmatpush1.bf16.msra.mxu0 0
      %1054 = vmatprep.subr.bf16.mxu0 0
      %1055 = vmatpush1.bf16.msra.mxu0 0
      %1056 = vmatprep.subr.bf16.mxu0 0
      %1057 = vmatpush1.bf16.msra.mxu0 0
      %1058 = vmatprep.subr.bf16.mxu0 0
      %1059 = vmatpush1.bf16.msra.mxu0 0
      %1060 = vmatprep.subr.bf16.mxu0 0
      %1061 = vmatpush1.bf16.msra.mxu0 0
      %1062 = vmatprep.subr.bf16.mxu0 0
      %1063 = vmatpush1.bf16.msra.mxu0 0
      %1064 = vmatprep.subr.bf16.mxu0 0
      %1065 = vmatpush1.bf16.msra.mxu0 0
      %1066 = vmatprep.mubr.bf16.mxu0 0
      %1067 = vmatmul.mubr.bf16.gmra.mrb[0].mxu0 %v992
      %v1068 = vpop.f32.mrb[0].mxu0
      %v1069 = vadd.f32 0.0, %v1068
      %v1070 = vpop.f32.mrb[0].mxu0
      %v1071 = vadd.f32 0.0, %v1070
      %v1072 = vpop.f32.mrb[0].mxu0
      %v1073 = vpop.f32.mrb[0].mxu0
      %1074 = vdwg.mxu0
      %v1075 = vadd.f32 %v988, %v1028
      %v1076 = vadd.f32 %v989, %v1030
      %v1077 = vadd.f32 %v990, %v1069
      %v1078 = vadd.f32 %v991, %v1071
      %v1079 = vxor.u32 %v1075, 2147483648
      %v1080 = vmul.f32 %v1079, 1.442695
      %v1081 = vpow.pop %v1080
      %v1082 = vadd.f32 %v1081, 1.0
      %v1083 = vrcp.pop %v1082
      %v1084 = vmul.f32 1.0, %v1083
      %v1085 = vxor.u32 %v1076, 2147483648
      %v1086 = vmul.f32 %v1085, 1.442695
      %v1087 = vpow.pop %v1086
      %v1088 = vadd.f32 %v1087, 1.0
      %v1089 = vrcp.pop %v1088
      %v1090 = vmul.f32 1.0, %v1089
      %v1091 = vtanh.pop %v1077
      %v1092 = vxor.u32 %v1078, 2147483648
      %v1093 = vmul.f32 %v1092, 1.442695
      %v1094 = vpow.pop %v1093
      %v1095 = vadd.f32 %v1094, 1.0
      %v1096 = vrcp.pop %v1095
      %v1097 = vmul.f32 1.0, %v1096
      %v1098 = vmul.f32 %v1090, %v982
      %v1099 = vmul.f32 %v1084, %v1091
      %v1100 = vadd.f32 %v1098, %v1099
      %v1101 = vtanh.pop %v1100
      %v1102 = vmul.f32 %v1097, %v1101
      %s1103 = smul.u32 3, 4
      %s1104 = smul.addr %s1103, 8
      %s1105 = scalar_lea.vmem [#allocation4], %s1104
      %v1106 = vld [vmem:[%s1105] sm:$0xff]
      %v1107 = vld [vmem:[%s1105 + $0x8] sm:$0xff]
      %v1108 = vld [vmem:[%s1105 + $0x10] sm:$0xff]
      %v1109 = vld [vmem:[%s1105 + $0x18] sm:$0xff]
      %v1110 = vpack.c.bf16 %v1102, %v1102
      %1111 = vmatprep.subr.bf16.mxu0 %v694
      %1112 = vmatpush1.bf16.msra.mxu0 %v693
      %1113 = vmatprep.subr.bf16.mxu0 %v698
      %1114 = vmatpush1.bf16.msra.mxu0 %v697
      %1115 = vmatprep.subr.bf16.mxu0 %v702
      %1116 = vmatpush1.bf16.msra.mxu0 %v701
      %1117 = vmatprep.subr.bf16.mxu0 %v706
      %1118 = vmatpush1.bf16.msra.mxu0 %v705
      %1119 = vmatprep.subr.bf16.mxu0 %v710
      %1120 = vmatpush1.bf16.msra.mxu0 %v709
      %1121 = vmatprep.subr.bf16.mxu0 %v714
      %1122 = vmatpush1.bf16.msra.mxu0 %v713
      %1123 = vmatprep.subr.bf16.mxu0 %v718
      %1124 = vmatpush1.bf16.msra.mxu0 %v717
      %1125 = vmatprep.subr.bf16.mxu0 %v722
      %1126 = vmatpush1.bf16.msra.mxu0 %v721
      %1127 = vmatprep.subr.bf16.mxu0 0
      %1128 = vmatpush1.bf16.msra.mxu0 0
      %1129 = vmatprep.subr.bf16.mxu0 0
      %1130 = vmatpush1.bf16.msra.mxu0 0
      %1131 = vmatprep.subr.bf16.mxu0 0
      %1132 = vmatpush1.bf16.msra.mxu0 0
      %1133 = vmatprep.subr.bf16.mxu0 0
      %1134 = vmatpush1.bf16.msra.mxu0 0
      %1135 = vmatprep.subr.bf16.mxu0 0
      %1136 = vmatpush1.bf16.msra.mxu0 0
      %1137 = vmatprep.subr.bf16.mxu0 0
      %1138 = vmatpush1.bf16.msra.mxu0 0
      %1139 = vmatprep.subr.bf16.mxu0 0
      %1140 = vmatpush1.bf16.msra.mxu0 0
      %1141 = vmatprep.subr.bf16.mxu0 0
      %1142 = vmatpush1.bf16.msra.mxu0 0
      %1143 = vmatprep.mubr.bf16.mxu0 0
      %1144 = vmatmul.mubr.bf16.gmra.mrb[0].mxu0 %v1110
      %v1145 = vpop.f32.mrb[0].mxu0
      %v1146 = vadd.f32 0.0, %v1145
      %v1147 = vpop.f32.mrb[0].mxu0
      %v1148 = vadd.f32 0.0, %v1147
      %v1149 = vpop.f32.mrb[0].mxu0
      %v1150 = vpop.f32.mrb[0].mxu0
      %1151 = vdwg.mxu0
      %1152 = vmatprep.subr.bf16.mxu0 %v696
      %1153 = vmatpush1.bf16.msra.mxu0 %v695
      %1154 = vmatprep.subr.bf16.mxu0 %v700
      %1155 = vmatpush1.bf16.msra.mxu0 %v699
      %1156 = vmatprep.subr.bf16.mxu0 %v704
      %1157 = vmatpush1.bf16.msra.mxu0 %v703
      %1158 = vmatprep.subr.bf16.mxu0 %v708
      %1159 = vmatpush1.bf16.msra.mxu0 %v707
      %1160 = vmatprep.subr.bf16.mxu0 %v712
      %1161 = vmatpush1.bf16.msra.mxu0 %v711
      %1162 = vmatprep.subr.bf16.mxu0 %v716
      %1163 = vmatpush1.bf16.msra.mxu0 %v715
      %1164 = vmatprep.subr.bf16.mxu0 %v720
      %1165 = vmatpush1.bf16.msra.mxu0 %v719
      %1166 = vmatprep.subr.bf16.mxu0 %v724
      %1167 = vmatpush1.bf16.msra.mxu0 %v723
      %1168 = vmatprep.subr.bf16.mxu0 0
      %1169 = vmatpush1.bf16.msra.mxu0 0
      %1170 = vmatprep.subr.bf16.mxu0 0
      %1171 = vmatpush1.bf16.msra.mxu0 0
      %1172 = vmatprep.subr.bf16.mxu0 0
      %1173 = vmatpush1.bf16.msra.mxu0 0
      %1174 = vmatprep.subr.bf16.mxu0 0
      %1175 = vmatpush1.bf16.msra.mxu0 0
      %1176 = vmatprep.subr.bf16.mxu0 0
      %1177 = vmatpush1.bf16.msra.mxu0 0
      %1178 = vmatprep.subr.bf16.mxu0 0
      %1179 = vmatpush1.bf16.msra.mxu0 0
      %1180 = vmatprep.subr.bf16.mxu0 0
      %1181 = vmatpush1.bf16.msra.mxu0 0
      %1182 = vmatprep.subr.bf16.mxu0 0
      %1183 = vmatpush1.bf16.msra.mxu0 0
      %1184 = vmatprep.mubr.bf16.mxu0 0
      %1185 = vmatmul.mubr.bf16.gmra.mrb[0].mxu0 %v1110
      %v1186 = vpop.f32.mrb[0].mxu0
      %v1187 = vadd.f32 0.0, %v1186
      %v1188 = vpop.f32.mrb[0].mxu0
      %v1189 = vadd.f32 0.0, %v1188
      %v1190 = vpop.f32.mrb[0].mxu0
      %v1191 = vpop.f32.mrb[0].mxu0
      %1192 = vdwg.mxu0
      %v1193 = vadd.f32 %v1106, %v1146
      %v1194 = vadd.f32 %v1107, %v1148
      %v1195 = vadd.f32 %v1108, %v1187
      %v1196 = vadd.f32 %v1109, %v1189
      %v1197 = vxor.u32 %v1193, 2147483648
      %v1198 = vmul.f32 %v1197, 1.442695
      %v1199 = vpow.pop %v1198
      %v1200 = vadd.f32 %v1199, 1.0
      %v1201 = vrcp.pop %v1200
      %v1202 = vmul.f32 1.0, %v1201
      %v1203 = vxor.u32 %v1194, 2147483648
      %v1204 = vmul.f32 %v1203, 1.442695
      %v1205 = vpow.pop %v1204
      %v1206 = vadd.f32 %v1205, 1.0
      %v1207 = vrcp.pop %v1206
      %v1208 = vmul.f32 1.0, %v1207
      %v1209 = vtanh.pop %v1195
      %v1210 = vxor.u32 %v1196, 2147483648
      %v1211 = vmul.f32 %v1210, 1.442695
      %v1212 = vpow.pop %v1211
      %v1213 = vadd.f32 %v1212, 1.0
      %v1214 = vrcp.pop %v1213
      %v1215 = vmul.f32 1.0, %v1214
      %v1216 = vmul.f32 %v1208, %v1100
      %v1217 = vmul.f32 %v1202, %v1209
      %v1218 = vadd.f32 %v1216, %v1217
      %v1219 = vtanh.pop %v1218
      %v1220 = vmul.f32 %v1215, %v1219
      %1221 = vst [vmem:[#allocation2] sm:$0xff] %v1220
      %1222 = vst [vmem:[#allocation3] sm:$0xff] %v1218
      %p1223 = scmp.eq.s32.totalorder %s25, 1
      // Predicated region
      $region61: #{capsule_bilstm_forward.1} parent=55 // pred_check
        %p1224 = pneg %p1223
      $region62: #{capsule_bilstm_forward.1} parent=55 // pred_check_branch
        %1226 = sbr.rel (%p1224) target = $region64
      $region63: #{capsule_bilstm_forward.1} parent=55 // pred_region
        %v1227 = vld [vmem:[%s351 + $0xc] sm:$0xf]
        %v1228 = vld [vmem:[%s4] sm:$0xff]
        %v1229 = vld [vmem:[%s4 + $0x8] sm:$0xff]
        %v1230 = vld [vmem:[%s4 + $0x10] sm:$0xff]
        %v1231 = vld [vmem:[%s4 + $0x18] sm:$0xff]
        %v1232 = vld [vmem:[%s5] sm:$0xf]
        %v1234 = vlaneseq
        %v1235 = vshrl.u32 %v1234, 7
        %v1236 = vsub.s32 0, %v1235
        %v1237 = vrot.slane %v1232, %v1236
        %v1238 = vlaneseq
        %v1239 = vshrl.u32 %v1238, 7
        %v1240 = vsub.s32 1, %v1239
        %v1241 = vrot.slane %v1232, %v1240
        %v1242 = vlaneseq
        %v1243 = vshrl.u32 %v1242, 7
        %v1244 = vsub.s32 2, %v1243
        %v1245 = vrot.slane %v1232, %v1244
        %v1246 = vlaneseq
        %v1247 = vshrl.u32 %v1246, 7
        %v1248 = vsub.s32 3, %v1247
        %v1249 = vrot.slane %v1232, %v1248
        %v1258 = vunpack.c.l.b16 %v1228
        %v1259 = vunpack.c.h.b16 %v1228
        %v1260 = vunpack.c.l.b16 %v1229
        %v1261 = vunpack.c.h.b16 %v1229
        %v1262 = vunpack.c.l.b16 %v1230
        %v1263 = vunpack.c.h.b16 %v1230
        %v1264 = vunpack.c.l.b16 %v1231
        %v1265 = vunpack.c.h.b16 %v1231
        %v1266 = vpack.c.b16 %v1262, %v1258
        %v1267 = vpack.c.b16 %v1263, %v1259
        %v1268 = vpack.c.b16 %v1264, %v1260
        %v1269 = vpack.c.b16 %v1265, %v1261
        %v1275 = vsel %vm426, %v1227, 0
        %1277 = vmatprep.subr.bf16.mxu0 %v1267
        %1278 = vmatpush1.bf16.msra.mxu0 %v1266
        %1279 = vmatprep.subr.bf16.mxu0 0
        %1280 = vmatpush1.bf16.msra.mxu0 0
        %1281 = vmatprep.subr.bf16.mxu0 0
        %1282 = vmatpush1.bf16.msra.mxu0 0
        %1283 = vmatprep.subr.bf16.mxu0 0
        %1284 = vmatpush1.bf16.msra.mxu0 0
        %1285 = vmatprep.subr.bf16.mxu0 0
        %1286 = vmatpush1.bf16.msra.mxu0 0
        %1287 = vmatprep.subr.bf16.mxu0 0
        %1288 = vmatpush1.bf16.msra.mxu0 0
        %1289 = vmatprep.subr.bf16.mxu0 0
        %1290 = vmatpush1.bf16.msra.mxu0 0
        %1291 = vmatprep.subr.bf16.mxu0 0
        %1292 = vmatpush1.bf16.msra.mxu0 0
        %1293 = vmatprep.subr.bf16.mxu0 0
        %1294 = vmatpush1.bf16.msra.mxu0 0
        %1295 = vmatprep.subr.bf16.mxu0 0
        %1296 = vmatpush1.bf16.msra.mxu0 0
        %1297 = vmatprep.subr.bf16.mxu0 0
        %1298 = vmatpush1.bf16.msra.mxu0 0
        %1299 = vmatprep.subr.bf16.mxu0 0
        %1300 = vmatpush1.bf16.msra.mxu0 0
        %1301 = vmatprep.subr.bf16.mxu0 0
        %1302 = vmatpush1.bf16.msra.mxu0 0
        %1303 = vmatprep.subr.bf16.mxu0 0
        %1304 = vmatpush1.bf16.msra.mxu0 0
        %1305 = vmatprep.subr.bf16.mxu0 0
        %1306 = vmatpush1.bf16.msra.mxu0 0
        %1307 = vmatprep.subr.bf16.mxu0 0
        %1308 = vmatpush1.bf16.msra.mxu0 0
        %1309 = vmatprep.mubr.bf16.mxu0 0
        %1310 = vmatmul.mubr.bf16.gmra.mrb[0].mxu0 %v1275
        %v1311 = vpop.f32.mrb[0].mxu0
        %v1312 = vadd.f32 %v1237, %v1311
        %v1313 = vpop.f32.mrb[0].mxu0
        %v1314 = vadd.f32 %v1241, %v1313
        %v1315 = vpop.f32.mrb[0].mxu0
        %v1316 = vpop.f32.mrb[0].mxu0
        %1317 = vdwg.mxu0
        %1318 = vmatprep.subr.bf16.mxu0 %v1269
        %1319 = vmatpush1.bf16.msra.mxu0 %v1268
        %1320 = vmatprep.subr.bf16.mxu0 0
        %1321 = vmatpush1.bf16.msra.mxu0 0
        %1322 = vmatprep.subr.bf16.mxu0 0
        %1323 = vmatpush1.bf16.msra.mxu0 0
        %1324 = vmatprep.subr.bf16.mxu0 0
        %1325 = vmatpush1.bf16.msra.mxu0 0
        %1326 = vmatprep.subr.bf16.mxu0 0
        %1327 = vmatpush1.bf16.msra.mxu0 0
        %1328 = vmatprep.subr.bf16.mxu0 0
        %1329 = vmatpush1.bf16.msra.mxu0 0
        %1330 = vmatprep.subr.bf16.mxu0 0
        %1331 = vmatpush1.bf16.msra.mxu0 0
        %1332 = vmatprep.subr.bf16.mxu0 0
        %1333 = vmatpush1.bf16.msra.mxu0 0
        %1334 = vmatprep.subr.bf16.mxu0 0
        %1335 = vmatpush1.bf16.msra.mxu0 0
        %1336 = vmatprep.subr.bf16.mxu0 0
        %1337 = vmatpush1.bf16.msra.mxu0 0
        %1338 = vmatprep.subr.bf16.mxu0 0
        %1339 = vmatpush1.bf16.msra.mxu0 0
        %1340 = vmatprep.subr.bf16.mxu0 0
        %1341 = vmatpush1.bf16.msra.mxu0 0
        %1342 = vmatprep.subr.bf16.mxu0 0
        %1343 = vmatpush1.bf16.msra.mxu0 0
        %1344 = vmatprep.subr.bf16.mxu0 0
        %1345 = vmatpush1.bf16.msra.mxu0 0
        %1346 = vmatprep.subr.bf16.mxu0 0
        %1347 = vmatpush1.bf16.msra.mxu0 0
        %1348 = vmatprep.subr.bf16.mxu0 0
        %1349 = vmatpush1.bf16.msra.mxu0 0
        %1350 = vmatprep.mubr.bf16.mxu0 0
        %1351 = vmatmul.mubr.bf16.gmra.mrb[0].mxu0 %v1275
        %v1352 = vpop.f32.mrb[0].mxu0
        %v1353 = vadd.f32 %v1245, %v1352
        %v1354 = vpop.f32.mrb[0].mxu0
        %v1355 = vadd.f32 %v1249, %v1354
        %v1356 = vpop.f32.mrb[0].mxu0
        %v1357 = vpop.f32.mrb[0].mxu0
        %1358 = vdwg.mxu0
        %v1359 = vxor.u32 %v1312, 2147483648
        %v1360 = vmul.f32 %v1359, 1.442695
        %v1361 = vpow.pop %v1360
        %v1362 = vadd.f32 %v1361, 1.0
        %v1363 = vrcp.pop %v1362
        %v1364 = vmul.f32 1.0, %v1363
        %v1365 = vxor.u32 %v1314, 2147483648
        %v1366 = vmul.f32 %v1365, 1.442695
        %v1367 = vpow.pop %v1366
        %v1368 = vadd.f32 %v1367, 1.0
        %v1369 = vrcp.pop %v1368
        %v1370 = vmul.f32 1.0, %v1369
        %v1371 = vtanh.pop %v1353
        %v1372 = vxor.u32 %v1355, 2147483648
        %v1373 = vmul.f32 %v1372, 1.442695
        %v1374 = vpow.pop %v1373
        %v1375 = vadd.f32 %v1374, 1.0
        %v1376 = vrcp.pop %v1375
        %v1377 = vmul.f32 1.0, %v1376
        %v1378 = vmul.f32 %v1370, 0.0
        %v1379 = vmul.f32 %v1364, %v1371
        %v1380 = vadd.f32 %v1378, %v1379
        %v1381 = vtanh.pop %v1380
        %v1382 = vmul.f32 %v1377, %v1381
        %v1383 = vld [vmem:[%s6] sm:$0xff]
        %v1384 = vld [vmem:[%s6 + $0x8] sm:$0xff]
        %v1385 = vld [vmem:[%s6 + $0x10] sm:$0xff]
        %v1386 = vld [vmem:[%s6 + $0x18] sm:$0xff]
        %v1387 = vld [vmem:[%s6 + $0x20] sm:$0xff]
        %v1388 = vld [vmem:[%s6 + $0x28] sm:$0xff]
        %v1389 = vld [vmem:[%s6 + $0x30] sm:$0xff]
        %v1390 = vld [vmem:[%s6 + $0x38] sm:$0xff]
        %v1391 = vld [vmem:[%s6 + $0x40] sm:$0xff]
        %v1392 = vld [vmem:[%s6 + $0x48] sm:$0xff]
        %v1393 = vld [vmem:[%s6 + $0x50] sm:$0xff]
        %v1394 = vld [vmem:[%s6 + $0x58] sm:$0xff]
        %v1395 = vld [vmem:[%s6 + $0x60] sm:$0xff]
        %v1396 = vld [vmem:[%s6 + $0x68] sm:$0xff]
        %v1397 = vld [vmem:[%s6 + $0x70] sm:$0xff]
        %v1398 = vld [vmem:[%s6 + $0x78] sm:$0xff]
        %v1399 = vld [vmem:[%s7] sm:$0xff]
        %v1400 = vld [vmem:[%s7 + $0x8] sm:$0xff]
        %v1401 = vld [vmem:[%s7 + $0x10] sm:$0xff]
        %v1402 = vld [vmem:[%s7 + $0x18] sm:$0xff]
        %v1403 = vld [vmem:[%s7 + $0x20] sm:$0xff]
        %v1404 = vld [vmem:[%s7 + $0x28] sm:$0xff]
        %v1405 = vld [vmem:[%s7 + $0x30] sm:$0xff]
        %v1406 = vld [vmem:[%s7 + $0x38] sm:$0xff]
        %v1407 = vld [vmem:[%s7 + $0x40] sm:$0xff]
        %v1408 = vld [vmem:[%s7 + $0x48] sm:$0xff]
        %v1409 = vld [vmem:[%s7 + $0x50] sm:$0xff]
        %v1410 = vld [vmem:[%s7 + $0x58] sm:$0xff]
        %v1411 = vld [vmem:[%s7 + $0x60] sm:$0xff]
        %v1412 = vld [vmem:[%s7 + $0x68] sm:$0xff]
        %v1413 = vld [vmem:[%s7 + $0x70] sm:$0xff]
        %v1414 = vld [vmem:[%s7 + $0x78] sm:$0xff]
        %1415 = vmatprep.subr.mxu0 0.0
        %1416 = vmatpush1.msra.mxu0 %v1399
        %1417 = vmatprep.subr.mxu0 0.0
        %1418 = vmatpush1.msra.mxu0 %v1400
        %1419 = vmatprep.subr.mxu0 0.0
        %1420 = vmatpush1.msra.mxu0 %v1401
        %1421 = vmatprep.subr.mxu0 0.0
        %1422 = vmatpush1.msra.mxu0 %v1402
        %1423 = vmatprep.subr.mxu0 0.0
        %1424 = vmatpush1.msra.mxu0 %v1403
        %1425 = vmatprep.subr.mxu0 0.0
        %1426 = vmatpush1.msra.mxu0 %v1404
        %1427 = vmatprep.subr.mxu0 0.0
        %1428 = vmatpush1.msra.mxu0 %v1405
        %1429 = vmatprep.subr.mxu0 0.0
        %1430 = vmatpush1.msra.mxu0 %v1406
        %1431 = vmatprep.subr.mxu0 0.0
        %1432 = vmatpush1.msra.mxu0 %v1407
        %1433 = vmatprep.subr.mxu0 0.0
        %1434 = vmatpush1.msra.mxu0 %v1408
        %1435 = vmatprep.subr.mxu0 0.0
        %1436 = vmatpush1.msra.mxu0 %v1409
        %1437 = vmatprep.subr.mxu0 0.0
        %1438 = vmatpush1.msra.mxu0 %v1410
        %1439 = vmatprep.subr.mxu0 0.0
        %1440 = vmatpush1.msra.mxu0 %v1411
        %1441 = vmatprep.subr.mxu0 0.0
        %1442 = vmatpush1.msra.mxu0 %v1412
        %1443 = vmatprep.subr.mxu0 0.0
        %1444 = vmatpush1.msra.mxu0 %v1413
        %1445 = vmatprep.subr.mxu0 0.0
        %1446 = vmatpush1.msra.mxu0 %v1414
        %1447 = vmatprep.subr.mxu0 0.0
        %1448 = vmatpush1.msra.mxu0 0.0
        %1449 = vmatprep.subr.mxu0 0.0
        %1450 = vmatpush1.msra.mxu0 0.0
        %1451 = vmatprep.subr.mxu0 0.0
        %1452 = vmatpush1.msra.mxu0 0.0
        %1453 = vmatprep.subr.mxu0 0.0
        %1454 = vmatpush1.msra.mxu0 0.0
        %1455 = vmatprep.subr.mxu0 0.0
        %1456 = vmatpush1.msra.mxu0 0.0
        %1457 = vmatprep.subr.mxu0 0.0
        %1458 = vmatpush1.msra.mxu0 0.0
        %1459 = vmatprep.subr.mxu0 0.0
        %1460 = vmatpush1.msra.mxu0 0.0
        %1461 = vmatprep.subr.mxu0 0.0
        %1462 = vmatpush1.msra.mxu0 0.0
        %1463 = vmatprep.subr.mxu0 0.0
        %1464 = vmatpush1.msra.mxu0 0.0
        %1465 = vmatprep.subr.mxu0 0.0
        %1466 = vmatpush1.msra.mxu0 0.0
        %1467 = vmatprep.subr.mxu0 0.0
        %1468 = vmatpush1.msra.mxu0 0.0
        %1469 = vmatprep.subr.mxu0 0.0
        %1470 = vmatpush1.msra.mxu0 0.0
        %1471 = vmatprep.subr.mxu0 0.0
        %1472 = vmatpush1.msra.mxu0 0.0
        %1473 = vmatprep.subr.mxu0 0.0
        %1474 = vmatpush1.msra.mxu0 0.0
        %1475 = vmatprep.subr.mxu0 0.0
        %1476 = vmatpush1.msra.mxu0 0.0
        %1477 = vmatprep.subr.mxu0 0.0
        %1478 = vmatpush1.msra.mxu0 0.0
        %1479 = vmatprep.mubr.f32.mxu0 0.0
        %1480 = vmatmul.mubr.f32.gmra.mrb[0].mxu0 %v1382
        %v1481 = vpop.f32.mrb[0].mxu0
        %v1482 = vadd.f32 0.0, %v1481
        %v1483 = vpop.f32.mrb[0].mxu0
        %1484 = vdwg.mxu0
        %1485 = vmatprep.subr.mxu0 0.0
        %1486 = vmatpush1.msra.mxu0 %v1383
        %1487 = vmatprep.subr.mxu0 0.0
        %1488 = vmatpush1.msra.mxu0 %v1384
        %1489 = vmatprep.subr.mxu0 0.0
        %1490 = vmatpush1.msra.mxu0 %v1385
        %1491 = vmatprep.subr.mxu0 0.0
        %1492 = vmatpush1.msra.mxu0 %v1386
        %1493 = vmatprep.subr.mxu0 0.0
        %1494 = vmatpush1.msra.mxu0 %v1387
        %1495 = vmatprep.subr.mxu0 0.0
        %1496 = vmatpush1.msra.mxu0 %v1388
        %1497 = vmatprep.subr.mxu0 0.0
        %1498 = vmatpush1.msra.mxu0 %v1389
        %1499 = vmatprep.subr.mxu0 0.0
        %1500 = vmatpush1.msra.mxu0 %v1390
        %1501 = vmatprep.subr.mxu0 0.0
        %1502 = vmatpush1.msra.mxu0 %v1391
        %1503 = vmatprep.subr.mxu0 0.0
        %1504 = vmatpush1.msra.mxu0 %v1392
        %1505 = vmatprep.subr.mxu0 0.0
        %1506 = vmatpush1.msra.mxu0 %v1393
        %1507 = vmatprep.subr.mxu0 0.0
        %1508 = vmatpush1.msra.mxu0 %v1394
        %1509 = vmatprep.subr.mxu0 0.0
        %1510 = vmatpush1.msra.mxu0 %v1395
        %1511 = vmatprep.subr.mxu0 0.0
        %1512 = vmatpush1.msra.mxu0 %v1396
        %1513 = vmatprep.subr.mxu0 0.0
        %1514 = vmatpush1.msra.mxu0 %v1397
        %1515 = vmatprep.subr.mxu0 0.0
        %1516 = vmatpush1.msra.mxu0 %v1398
        %1517 = vmatprep.subr.mxu0 0.0
        %1518 = vmatpush1.msra.mxu0 0.0
        %1519 = vmatprep.subr.mxu0 0.0
        %1520 = vmatpush1.msra.mxu0 0.0
        %1521 = vmatprep.subr.mxu0 0.0
        %1522 = vmatpush1.msra.mxu0 0.0
        %1523 = vmatprep.subr.mxu0 0.0
        %1524 = vmatpush1.msra.mxu0 0.0
        %1525 = vmatprep.subr.mxu0 0.0
        %1526 = vmatpush1.msra.mxu0 0.0
        %1527 = vmatprep.subr.mxu0 0.0
        %1528 = vmatpush1.msra.mxu0 0.0
        %1529 = vmatprep.subr.mxu0 0.0
        %1530 = vmatpush1.msra.mxu0 0.0
        %1531 = vmatprep.subr.mxu0 0.0
        %1532 = vmatpush1.msra.mxu0 0.0
        %1533 = vmatprep.subr.mxu0 0.0
        %1534 = vmatpush1.msra.mxu0 0.0
        %1535 = vmatprep.subr.mxu0 0.0
        %1536 = vmatpush1.msra.mxu0 0.0
        %1537 = vmatprep.subr.mxu0 0.0
        %1538 = vmatpush1.msra.mxu0 0.0
        %1539 = vmatprep.subr.mxu0 0.0
        %1540 = vmatpush1.msra.mxu0 0.0
        %1541 = vmatprep.subr.mxu0 0.0
        %1542 = vmatpush1.msra.mxu0 0.0
        %1543 = vmatprep.subr.mxu0 0.0
        %1544 = vmatpush1.msra.mxu0 0.0
        %1545 = vmatprep.subr.mxu0 0.0
        %1546 = vmatpush1.msra.mxu0 0.0
        %1547 = vmatprep.subr.mxu0 0.0
        %1548 = vmatpush1.msra.mxu0 0.0
        %1549 = vmatprep.mubr.f32.mxu0 0.0
        %1550 = vmatmul.mubr.f32.gmra.mrb[0].mxu0 %v1220
        %v1551 = vpop.f32.mrb[0].mxu0
        %v1552 = vadd.f32 %v1482, %v1551
        %v1553 = vpop.f32.mrb[0].mxu0
        %1554 = vdwg.mxu0
        %v1555 = vld [vmem:[%s8] sm:$0x1]
        %v1557 = vlaneseq
        %v1558 = vshrl.u32 %v1557, 7
        %v1559 = vsub.s32 0, %v1558
        %v1560 = vrot.slane %v1555, %v1559
        %v1562 = vadd.f32 %v1552, %v1560
        %v1563 = vxor.u32 %v1562, 2147483648
        %v1564 = vmul.f32 %v1563, 1.442695
        %v1565 = vpow.pop %v1564
        %v1566 = vadd.f32 %v1565, 1.0
        %v1567 = vrcp.pop %v1566
        %v1568 = vmul.f32 1.0, %v1567
        %vm1569 = vcmask 31744
        %1570 = vst.msk [vmem:[%s358] sm:$0xff] %vm1569, %v1568
      $region64: #{capsule_bilstm_forward.1} parent=55 // pred_fallthru
        _
      %p1571 = scmp.lt.s32.totalorder %s24, 0
      %s1572 = scalar_select %p1571, %s24, 0
      %s1573 = smul.addr %s1572, 8
      %s1574 = scalar_lea.vmem %s9, %s1573
      // Predicated region
      $region65: #{capsule_bilstm_forward.1} parent=55 // pred_check
        %p1575 = pneg %p248
      $region66: #{capsule_bilstm_forward.1} parent=55 // pred_check_branch
        %1577 = sbr.rel (%p1575) target = $region68
      $region67: #{capsule_bilstm_forward.1} parent=55 // pred_region
        _
      $region68: #{capsule_bilstm_forward.1} parent=55 // pred_fallthru
        _
      // Predicated region
      $region69: #{capsule_bilstm_forward.1} parent=55 // pred_check
        %p1578 = pneg %p248
      $region70: #{capsule_bilstm_forward.1} parent=55 // pred_check_branch
        %1580 = sbr.rel (%p1578) target = $region72
      $region71: #{capsule_bilstm_forward.1} parent=55 // pred_region
        %p1581 = scmp.lt.s32.totalorder %s24, 0
        %s1582 = scalar_select %p1581, %s24, 0
        %s1583 = smul.addr %s1582, 8
        %s1584 = scalar_lea.vmem %s9, %s1583
      $region72: #{capsule_bilstm_forward.1} parent=55 // pred_fallthru
        _
    $region56: #{capsule_bilstm_forward.1} parent=5 // pred_fallthru
      _
    %p1585 = scmp.le.s32.totalorder 2, %s15
    // Predicated region
    $region73: #{capsule_bilstm_forward.1} parent=5 // pred_check
      %p1586 = pneg %p1585
    $region74: #{capsule_bilstm_forward.1} parent=5 // pred_check_branch
      %1588 = sbr.rel (%p1586) target = $region76
    $region75: #{capsule_bilstm_forward.1} parent=5 // pred_region
      %s1589 = ssub.s32 %s15, 2
    $region76: #{capsule_bilstm_forward.1} parent=5 // pred_fallthru
      _
  $region6: #{capsule_bilstm_forward.1} parent=0 // loop_footer
    %s19 = sadd.s32 1, %s15
  $region7: #{capsule_bilstm_forward.1} parent=0 // loop_footer_branch
    %14 = sbr.rel target = $region3
  $region8: #{capsule_bilstm_forward.1} parent=0 // loop_exit
    _

</llo_original>
